<compile_context>
chip_gen: v5e
topology: v5e:2x2
jax: 0.10.0
libtpu: 0.0.40
codegen_flags: <defaults>
</compile_context>

<pallas_src>
import functools

import jax
import jax.numpy as jnp
import numpy as np
from jax.experimental import pallas as pl
from jax.experimental.pallas import tpu as pltpu


def _round_up(x, m):
    return ((x + m - 1) // m) * m


def _attn_lstm_kernel(
    bH_ref,        # (b, Tp, I)  encoder features (Tp = T rounded up to 8)
    h_ref,         # (b, H)      prev hidden
    c_ref,         # (b, H)      prev cell
    rbias_ref,     # (b, 4H)     char_onehots @ w_ih[:, I:].T + b_ih + b_hh
    wi2h_ref,      # (I, H)      i2h weight, pre-transposed
    wh2h_ref,      # (H, H)      h2h weight, pre-transposed
    vecs_ref,      # (2, H)      row 0 = b_h2h, row 1 = w_score
    wctx_ref,      # (I, 4H)     LSTM input weights, context columns, pre-transposed
    whh_ref,       # (H, 4H)     LSTM hidden weights, pre-transposed
    hc_out_ref,    # (b, 2H)     [h_new | c_new] packed, lane-dense
    alpha_out_ref, # (b, Tp)     lane-dense alpha
    *, hidden, seq_len,
):
    H = hidden
    bH3 = bH_ref[...]                           # [b, Tp, I]
    b, Tp, I = bH3.shape
    h_prev = h_ref[...]                         # [b, H]
    c_prev = c_ref[...]                         # [b, H]
    vecs = vecs_ref[...]                        # [2, H]

    # ---- attention ----
    # i2h(batch_H): Tp is a multiple of 8 (wrapper pads), so this reshape does not
    # cross (8,128) tile boundaries -> free view; one MXU push with M = b*Tp.
    proj2 = jnp.dot(bH3.reshape(b * Tp, I), wi2h_ref[...],
                    preferred_element_type=jnp.float32)               # [b*Tp, H]
    hproj = jnp.dot(h_prev, wh2h_ref[...],
                    preferred_element_type=jnp.float32) + vecs[0:1, :]  # [b, H]
    res3 = jnp.tanh(proj2.reshape(b, Tp, H) + hproj[:, None, :])        # [b, Tp, H]

    # score(res): Linear(H, 1, bias=False) -> lane reduce over H (tiny vs. the matmuls).
    e = jnp.sum(res3 * vecs[1:2, :][None], axis=-1)                     # [b, Tp]
    if Tp != seq_len:
        # Mask padded time steps out of the softmax (padded batch_H columns are zero,
        # but tanh(h2h(h)) makes their scores nonzero).
        t_idx = jax.lax.broadcasted_iota(jnp.int32, (b, Tp), 1)
        e = jnp.where(t_idx < seq_len, e, -1e30)

    # softmax over T (T on the lane axis -> lane-dense alpha output).
    e_max = jnp.max(e, axis=-1, keepdims=True)
    p = jnp.exp(e - e_max)
    alpha = p / jnp.sum(p, axis=-1, keepdims=True)                      # [b, Tp]

    # context[b] = alpha[b] @ batch_H[b]; contraction dim T is small, so a broadcast
    # multiply + sublane reduce beats b unrolled M=1 MXU pushes (one XLU relayout of
    # alpha from lanes to sublanes; fine at current T).
    context = jnp.sum(bH3 * alpha[:, :, None], axis=1)                  # [b, I]

    # ---- LSTM cell: gates = context @ Wctx + h_prev @ Whh + per-row bias ----
    gates = (
        jnp.dot(context, wctx_ref[...], preferred_element_type=jnp.float32)
        + jnp.dot(h_prev, whh_ref[...], preferred_element_type=jnp.float32)
        + rbias_ref[...]
    )                                                                   # [b, 4H]
    i_g = jax.nn.sigmoid(gates[:, 0 * H:1 * H])
    f_g = jax.nn.sigmoid(gates[:, 1 * H:2 * H])
    g_g = jnp.tanh(gates[:, 2 * H:3 * H])
    o_g = jax.nn.sigmoid(gates[:, 3 * H:4 * H])
    c_new = f_g * c_prev + i_g * g_g
    h_new = o_g * jnp.tanh(c_new)

    hc_out_ref[...] = jnp.concatenate([h_new, c_new], axis=-1)  # one lane-dense store
    alpha_out_ref[...] = alpha


def attention_lstm_cell(prev_hidden, batch_H, char_onehots, params, *, b_tile=None):
    """Pallas implementation of AttentionLSTMCell.forward (LSTM variant)."""
    h0, c0 = prev_hidden
    B, T, I = batch_H.shape
    H = h0.shape[1]
    T_pad = _round_up(T, 8)

    # --- wrapper glue (XLA side) ------------------------------------------------
    # Fold the one-hot part of the gate matmul and both LSTM biases into one per-row
    # additive term; removes the (E, 4H) weight slab from the kernel entirely.
    # TODO(synk): when char_onehots are guaranteed strictly one-hot, replace this with
    # a row gather: jnp.take(w_ih[:, I:].T, char_idx, axis=0) (or scalar-prefetch +
    # pl.Element gather) to skip the dense [B,E]x[E,4H] work as well.
    w_ih = params["w_ih"]
    row_bias = (
        jax.lax.dot(char_onehots, w_ih[:, I:].T, precision=jax.lax.Precision.HIGHEST)
        + params["b_ih"] + params["b_hh"]
    )                                                              # [B, 4H]

    wi2h_t = params["w_i2h"].T                                     # [I, H]
    wh2h_t = params["w_h2h"].T                                     # [H, H]
    vecs = jnp.stack([params["b_h2h"], params["w_score"].reshape(H)], axis=0)  # [2, H]
    wctx = w_ih[:, :I].T                                           # [I, 4H]
    whh = params["w_hh"].T                                         # [H, 4H]

    # --- batch tile: multiple of 8, VMEM-budget driven ---------------------------
    # Per-batch-row f32 bytes resident in the pipeline: batch-tiled inputs/outputs are
    # double-buffered; add the largest in-kernel intermediates.
    per_row_bytes = 4 * (
        2 * (T_pad * I + 2 * H + 4 * H)      # bH, h, c, row_bias (2 buffers each)
        + 2 * (2 * H + T_pad)                # hc / alpha outputs (2 buffers each)
        + 3 * T_pad * H + 8 * H              # proj/res intermediates + gates
    )
    if b_tile is None:
        budget = 40 * 1024 * 1024            # headroom under v7x's 64 MiB VMEM
        max_rows = max(8, (budget // per_row_bytes) // 8 * 8)
        B8 = _round_up(max(B, 1), 8)
        if B8 <= max_rows:
            # The grid is a sequential loop on one TensorCore -> prefer a single step.
            # TODO(synk): on v7x (2 TCs/chip) prefer an even number of grid steps.
            b_tile = B8
        elif max_rows >= 128:
            b_tile = (max_rows // 128) * 128  # fill the MXU M dimension
        else:
            b_tile = max_rows
    else:
        b_tile = max(8, _round_up(b_tile, 8))

    n_steps = -(-B // b_tile)                # cdiv
    B_pad = n_steps * b_tile

    # Padded batch rows are all-zero: softmax degenerates to uniform alpha (no NaN)
    # and gates are zero; the garbage h/c rows are sliced off below (benign).
    bH = jnp.pad(batch_H, ((0, B_pad - B), (0, T_pad - T), (0, 0)))
    h0p = jnp.pad(h0, ((0, B_pad - B), (0, 0)))
    c0p = jnp.pad(c0, ((0, B_pad - B), (0, 0)))
    rbp = jnp.pad(row_bias, ((0, B_pad - B), (0, 0)))

    # VMEM limit sized from actual block bytes (clamped to [32, 64] MiB so it is safe
    # on every chip generation; on v5e/v6e this could be raised further if needed).
    weight_bytes = 4 * (I * H + H * H + 2 * H + I * 4 * H + H * 4 * H)
    needed = 2 * weight_bytes + b_tile * per_row_bytes + (8 << 20)
    vmem_limit = int(min(64 << 20, max(32 << 20, needed)))

    kernel = functools.partial(_attn_lstm_kernel, hidden=H, seq_len=T)

    out_shape = (
        jax.ShapeDtypeStruct((B_pad, 2 * H), jnp.float32),     # [h_new | c_new]
        jax.ShapeDtypeStruct((B_pad, T_pad), jnp.float32),     # lane-dense alpha
    )
    out_specs = (
        pl.BlockSpec((b_tile, 2 * H), lambda b: (b, 0)),
        pl.BlockSpec((b_tile, T_pad), lambda b: (b, 0)),
    )

    def _call(single_buffer_weights):
        def inv(shape):
            # Grid-invariant weights: constant index_map, so single-buffering loses no
            # prefetch overlap and halves their VMEM footprint.
            if single_buffer_weights:
                return pl.BlockSpec(shape, lambda b: (0, 0),
                                    pipeline_mode=pl.Buffered(1))
            return pl.BlockSpec(shape, lambda b: (0, 0))

        in_specs = [
            pl.BlockSpec((b_tile, T_pad, I), lambda b: (b, 0, 0)),   # batch_H
            pl.BlockSpec((b_tile, H), lambda b: (b, 0)),             # h_prev
            pl.BlockSpec((b_tile, H), lambda b: (b, 0)),             # c_prev
            pl.BlockSpec((b_tile, 4 * H), lambda b: (b, 0)),         # per-row gate bias
            inv((I, H)),                                             # i2h^T
            inv((H, H)),                                             # h2h^T
            inv((2, H)),                                             # [b_h2h ; w_score]
            inv((I, 4 * H)),                                         # w_ih ctx cols ^T
            inv((H, 4 * H)),                                         # w_hh ^T
        ]
        return pl.pallas_call(
            kernel,
            grid=(n_steps,),
            in_specs=in_specs,
            out_specs=out_specs,
            out_shape=out_shape,
            compiler_params=pltpu.CompilerParams(
                dimension_semantics=("parallel",),
                vmem_limit_bytes=vmem_limit,
            ),
        )(bH, h0p, c0p, rbp, wi2h_t, wh2h_t, vecs, wctx, whh)

    try:
        hc, alpha_full = _call(True)
        jax.block_until_ready((hc, alpha_full))
    except Exception:
        # Fallback if this JAX/Mosaic build rejects pipeline_mode=pl.Buffered(1).
        hc, alpha_full = _call(False)

    h_new = hc[:B, :H]
    c_new = hc[:B, H:]
    # PyTorch returns alpha after permute(0, 2, 1): [B, 1, T].
    alpha = alpha_full[:B, :T].reshape(B, 1, T)
    return (h_new, c_new), alpha


def _reference_forward(prev_hidden, batch_H, char_onehots, P):
    """Pure-JAX reference mirroring the PyTorch module exactly."""
    h0, c0 = prev_hidden
    H = h0.shape[1]
    bproj = jnp.einsum("bti,hi->bth", batch_H, P["w_i2h"])
    hproj = (h0 @ P["w_h2h"].T + P["b_h2h"])[:, None, :]
    res = jnp.tanh(bproj + hproj)
    e = jnp.einsum("bth,oh->bto", res, P["w_score"])           # [B, T, 1]
    alpha = jax.nn.softmax(e, axis=1)
    alpha_p = jnp.transpose(alpha, (0, 2, 1))                  # [B, 1, T]
    context = jnp.squeeze(alpha_p @ batch_H, axis=1)           # [B, I]
    concat = jnp.concatenate([context, char_onehots], axis=1)  # [B, I+E]
    gates = concat @ P["w_ih"].T + P["b_ih"] + h0 @ P["w_hh"].T + P["b_hh"]
    i_g = jax.nn.sigmoid(gates[:, 0 * H:1 * H])
    f_g = jax.nn.sigmoid(gates[:, 1 * H:2 * H])
    g_g = jnp.tanh(gates[:, 2 * H:3 * H])
    o_g = jax.nn.sigmoid(gates[:, 3 * H:4 * H])
    c_new = f_g * c0 + i_g * g_g
    h_new = o_g * jnp.tanh(c_new)
    return (h_new, c_new), alpha_p


if __name__ == "__main__":
    # Small shapes consistent with the module's forward.
    B, T = 2, 8
    input_size, hidden_size, num_embeddings = 32, 32, 8
    H, I, E = hidden_size, input_size, num_embeddings

    key = jax.random.PRNGKey(0)
    ks = jax.random.split(key, 12)
    u = lambda k, shape, scale: jax.random.uniform(
        k, shape, jnp.float32, minval=-scale, maxval=scale)

    # Deterministic parameter init (PyTorch-style uniform by fan-in).
    params = {
        "w_i2h": u(ks[0], (H, I), 1.0 / np.sqrt(I)),
        "w_h2h": u(ks[1], (H, H), 1.0 / np.sqrt(H)),
        "b_h2h": u(ks[2], (H,), 1.0 / np.sqrt(H)),
        "w_score": u(ks[3], (1, H), 1.0 / np.sqrt(H)),
        "w_ih": u(ks[4], (4 * H, I + E), 1.0 / np.sqrt(H)),
        "b_ih": u(ks[5], (4 * H,), 1.0 / np.sqrt(H)),
        "w_hh": u(ks[6], (4 * H, H), 1.0 / np.sqrt(H)),
        "b_hh": u(ks[7], (4 * H,), 1.0 / np.sqrt(H)),
    }

    batch_H = jax.random.normal(ks[8], (B, T, I), jnp.float32)
    h0 = jax.random.normal(ks[9], (B, H), jnp.float32)
    c0 = jax.random.normal(ks[10], (B, H), jnp.float32)
    onehot_idx = jax.random.randint(ks[11], (B,), 0, E)
    char_onehots = jax.nn.one_hot(onehot_idx, E, dtype=jnp.float32)

    (h_new, c_new), alpha = attention_lstm_cell((h0, c0), batch_H, char_onehots, params)
    jax.block_until_ready((h_new, c_new, alpha))

    (h_ref, c_ref), alpha_ref = _reference_forward((h0, c0), batch_H, char_onehots, params)
    np.testing.assert_allclose(np.asarray(h_new), np.asarray(h_ref), rtol=1e-5, atol=1e-5)
    np.testing.assert_allclose(np.asarray(c_new), np.asarray(c_ref), rtol=1e-5, atol=1e-5)
    np.testing.assert_allclose(np.asarray(alpha), np.asarray(alpha_ref), rtol=1e-5, atol=1e-5)

    print("KERNEL_OK")
</pallas_src>

<mosaic_0001>
module attributes {stable_mosaic.version = 11 : i64} {
  func.func @_attn_lstm_kernel(%arg0: i32, %arg1: memref<8x8x32xf32, #tpu.memory_space<vmem>>, %arg2: memref<8x32xf32, #tpu.memory_space<vmem>>, %arg3: memref<8x32xf32, #tpu.memory_space<vmem>>, %arg4: memref<8x128xf32, #tpu.memory_space<vmem>>, %arg5: memref<32x32xf32, #tpu.memory_space<vmem>>, %arg6: memref<32x32xf32, #tpu.memory_space<vmem>>, %arg7: memref<2x32xf32, #tpu.memory_space<vmem>>, %arg8: memref<32x128xf32, #tpu.memory_space<vmem>>, %arg9: memref<32x128xf32, #tpu.memory_space<vmem>>, %arg10: memref<8x64xf32, #tpu.memory_space<vmem>>, %arg11: memref<8x8xf32, #tpu.memory_space<vmem>>) attributes {dimension_semantics = [#tpu.dimension_semantics<parallel>], iteration_bounds = array<i64: 1>, scalar_prefetch = 0 : i64, scratch_operands = 0 : i64, tpu.core_type = #tpu.core_type<tc>, window_params = [{transform_indices = @transform_0, window_bounds = array<i64: 8, 8, 32>}, {transform_indices = @transform_1, window_bounds = array<i64: 8, 32>}, {transform_indices = @transform_2, window_bounds = array<i64: 8, 32>}, {transform_indices = @transform_3, window_bounds = array<i64: 8, 128>}, {pipeline_mode = #tpu.pipeline_mode<synchronous>, transform_indices = @transform_4, window_bounds = array<i64: 32, 32>}, {pipeline_mode = #tpu.pipeline_mode<synchronous>, transform_indices = @transform_5, window_bounds = array<i64: 32, 32>}, {pipeline_mode = #tpu.pipeline_mode<synchronous>, transform_indices = @transform_6, window_bounds = array<i64: 2, 32>}, {pipeline_mode = #tpu.pipeline_mode<synchronous>, transform_indices = @transform_7, window_bounds = array<i64: 32, 128>}, {pipeline_mode = #tpu.pipeline_mode<synchronous>, transform_indices = @transform_8, window_bounds = array<i64: 32, 128>}, {transform_indices = @transform_9, window_bounds = array<i64: 8, 64>}, {transform_indices = @transform_10, window_bounds = array<i64: 8, 8>}]} {
    %c0 = arith.constant 0 : index
    %c0_0 = arith.constant 0 : index
    %c0_1 = arith.constant 0 : index
    %0 = vector.load %arg1[%c0, %c0_0, %c0_1] : memref<8x8x32xf32, #tpu.memory_space<vmem>>, vector<8x8x32xf32>
    %c0_2 = arith.constant 0 : index
    %c0_3 = arith.constant 0 : index
    %1 = vector.load %arg2[%c0_2, %c0_3] : memref<8x32xf32, #tpu.memory_space<vmem>>, vector<8x32xf32>
    %c0_4 = arith.constant 0 : index
    %c0_5 = arith.constant 0 : index
    %2 = vector.load %arg3[%c0_4, %c0_5] : memref<8x32xf32, #tpu.memory_space<vmem>>, vector<8x32xf32>
    %c0_6 = arith.constant 0 : index
    %c0_7 = arith.constant 0 : index
    %3 = vector.load %arg7[%c0_6, %c0_7] : memref<2x32xf32, #tpu.memory_space<vmem>>, vector<2x32xf32>
    %4 = vector.shape_cast %0 : vector<8x8x32xf32> to vector<64x32xf32>
    %c0_8 = arith.constant 0 : index
    %c0_9 = arith.constant 0 : index
    %5 = vector.load %arg5[%c0_8, %c0_9] : memref<32x32xf32, #tpu.memory_space<vmem>>, vector<32x32xf32>
    %cst = arith.constant dense<0.000000e+00> : vector<64x32xf32>
    %6 = tpu.matmul %4, %5, %cst {dimension_numbers = #tpu.dot_dimension_numbers<[1], [0], [0], [1], [0, 0, 1, 1], [], []>} : vector<64x32xf32>, vector<32x32xf32>, vector<64x32xf32> -> vector<64x32xf32>
    %c0_10 = arith.constant 0 : index
    %c0_11 = arith.constant 0 : index
    %7 = vector.load %arg6[%c0_10, %c0_11] : memref<32x32xf32, #tpu.memory_space<vmem>>, vector<32x32xf32>
    %cst_12 = arith.constant dense<0.000000e+00> : vector<8x32xf32>
    %8 = tpu.matmul %1, %7, %cst_12 {dimension_numbers = #tpu.dot_dimension_numbers<[1], [0], [0], [1], [0, 0, 1, 1], [], []>} : vector<8x32xf32>, vector<32x32xf32>, vector<8x32xf32> -> vector<8x32xf32>
    %9 = vector.extract_strided_slice %3 {offsets = [0, 0], sizes = [1, 32], strides = [1, 1]} : vector<2x32xf32> to vector<1x32xf32>
    %10 = vector.broadcast %9 : vector<1x32xf32> to vector<8x32xf32>
    %11 = arith.addf %8, %10 : vector<8x32xf32>
    %12 = vector.shape_cast %6 : vector<64x32xf32> to vector<8x8x32xf32>
    %13 = vector.shape_cast %11 : vector<8x32xf32> to vector<8x1x32xf32>
    %14 = vector.broadcast %13 : vector<8x1x32xf32> to vector<8x8x32xf32>
    %15 = arith.addf %12, %14 : vector<8x8x32xf32>
    %16 = math.tanh %15 : vector<8x8x32xf32>
    %17 = vector.extract_strided_slice %3 {offsets = [1, 0], sizes = [1, 32], strides = [1, 1]} : vector<2x32xf32> to vector<1x32xf32>
    %18 = vector.shape_cast %17 : vector<1x32xf32> to vector<1x1x32xf32>
    %19 = vector.broadcast %18 : vector<1x1x32xf32> to vector<8x8x32xf32>
    %20 = arith.mulf %16, %19 : vector<8x8x32xf32>
    %cst_13 = arith.constant dense<0.000000e+00> : vector<8x8xf32>
    %21 = vector.multi_reduction <add>, %20, %cst_13 [2] : vector<8x8x32xf32> to vector<8x8xf32>
    %cst_14 = arith.constant dense<0xFF800000> : vector<8xf32>
    %22 = vector.multi_reduction <maximumf>, %21, %cst_14 [1] : vector<8x8xf32> to vector<8xf32>
    %23 = vector.shape_cast %22 : vector<8xf32> to vector<8x1xf32>
    %24 = vector.broadcast %23 : vector<8x1xf32> to vector<8x8xf32>
    %25 = arith.subf %21, %24 : vector<8x8xf32>
    %26 = math.exp %25 : vector<8x8xf32>
    %cst_15 = arith.constant dense<0.000000e+00> : vector<8xf32>
    %27 = vector.multi_reduction <add>, %26, %cst_15 [1] : vector<8x8xf32> to vector<8xf32>
    %28 = vector.shape_cast %27 : vector<8xf32> to vector<8x1xf32>
    %29 = vector.broadcast %28 : vector<8x1xf32> to vector<8x8xf32>
    %30 = arith.divf %26, %29 : vector<8x8xf32>
    %31 = vector.shape_cast %30 : vector<8x8xf32> to vector<8x8x1xf32>
    %32 = vector.broadcast %31 : vector<8x8x1xf32> to vector<8x8x32xf32>
    %33 = arith.mulf %0, %32 : vector<8x8x32xf32>
    %cst_16 = arith.constant dense<0.000000e+00> : vector<8x32xf32>
    %34 = vector.multi_reduction <add>, %33, %cst_16 [1] : vector<8x8x32xf32> to vector<8x32xf32>
    %c0_17 = arith.constant 0 : index
    %c0_18 = arith.constant 0 : index
    %35 = vector.load %arg8[%c0_17, %c0_18] : memref<32x128xf32, #tpu.memory_space<vmem>>, vector<32x128xf32>
    %cst_19 = arith.constant dense<0.000000e+00> : vector<8x128xf32>
    %36 = tpu.matmul %34, %35, %cst_19 {dimension_numbers = #tpu.dot_dimension_numbers<[1], [0], [0], [1], [0, 0, 1, 1], [], []>} : vector<8x32xf32>, vector<32x128xf32>, vector<8x128xf32> -> vector<8x128xf32>
    %c0_20 = arith.constant 0 : index
    %c0_21 = arith.constant 0 : index
    %37 = vector.load %arg9[%c0_20, %c0_21] : memref<32x128xf32, #tpu.memory_space<vmem>>, vector<32x128xf32>
    %cst_22 = arith.constant dense<0.000000e+00> : vector<8x128xf32>
    %38 = tpu.matmul %1, %37, %cst_22 {dimension_numbers = #tpu.dot_dimension_numbers<[1], [0], [0], [1], [0, 0, 1, 1], [], []>} : vector<8x32xf32>, vector<32x128xf32>, vector<8x128xf32> -> vector<8x128xf32>
    %39 = arith.addf %36, %38 : vector<8x128xf32>
    %c0_23 = arith.constant 0 : index
    %c0_24 = arith.constant 0 : index
    %40 = vector.load %arg4[%c0_23, %c0_24] : memref<8x128xf32, #tpu.memory_space<vmem>>, vector<8x128xf32>
    %41 = arith.addf %39, %40 : vector<8x128xf32>
    %42 = vector.extract_strided_slice %41 {offsets = [0, 0], sizes = [8, 32], strides = [1, 1]} : vector<8x128xf32> to vector<8x32xf32>
    %43 = arith.negf %42 : vector<8x32xf32>
    %44 = math.exp %43 : vector<8x32xf32>
    %cst_25 = arith.constant 1.000000e+00 : f32
    %45 = vector.broadcast %cst_25 : f32 to vector<8x32xf32>
    %46 = arith.addf %45, %44 : vector<8x32xf32>
    %47 = arith.divf %45, %46 : vector<8x32xf32>
    %48 = vector.extract_strided_slice %41 {offsets = [0, 32], sizes = [8, 32], strides = [1, 1]} : vector<8x128xf32> to vector<8x32xf32>
    %49 = arith.negf %48 : vector<8x32xf32>
    %50 = math.exp %49 : vector<8x32xf32>
    %cst_26 = arith.constant 1.000000e+00 : f32
    %51 = vector.broadcast %cst_26 : f32 to vector<8x32xf32>
    %52 = arith.addf %51, %50 : vector<8x32xf32>
    %53 = arith.divf %51, %52 : vector<8x32xf32>
    %54 = vector.extract_strided_slice %41 {offsets = [0, 64], sizes = [8, 32], strides = [1, 1]} : vector<8x128xf32> to vector<8x32xf32>
    %55 = math.tanh %54 : vector<8x32xf32>
    %56 = vector.extract_strided_slice %41 {offsets = [0, 96], sizes = [8, 32], strides = [1, 1]} : vector<8x128xf32> to vector<8x32xf32>
    %57 = arith.negf %56 : vector<8x32xf32>
    %58 = math.exp %57 : vector<8x32xf32>
    %cst_27 = arith.constant 1.000000e+00 : f32
    %59 = vector.broadcast %cst_27 : f32 to vector<8x32xf32>
    %60 = arith.addf %59, %58 : vector<8x32xf32>
    %61 = arith.divf %59, %60 : vector<8x32xf32>
    %62 = arith.mulf %53, %2 : vector<8x32xf32>
    %63 = arith.mulf %47, %55 : vector<8x32xf32>
    %64 = arith.addf %62, %63 : vector<8x32xf32>
    %65 = math.tanh %64 : vector<8x32xf32>
    %66 = arith.mulf %61, %65 : vector<8x32xf32>
    %67 = tpu.concatenate %66, %64 in 1 : vector<8x32xf32>, vector<8x32xf32> -> vector<8x64xf32>
    %c0_28 = arith.constant 0 : index
    %c0_29 = arith.constant 0 : index
    %68 = vector.load %arg10[%c0_28, %c0_29] : memref<8x64xf32, #tpu.memory_space<vmem>>, vector<8x64xf32>
    tpu.vector_store %arg10[%c0_28, %c0_29], %67 {strides = array<i32>} : memref<8x64xf32, #tpu.memory_space<vmem>>, vector<8x64xf32>,
    %c0_30 = arith.constant 0 : index
    %c0_31 = arith.constant 0 : index
    %69 = vector.load %arg11[%c0_30, %c0_31] : memref<8x8xf32, #tpu.memory_space<vmem>>, vector<8x8xf32>
    tpu.vector_store %arg11[%c0_30, %c0_31], %30 {strides = array<i32>} : memref<8x8xf32, #tpu.memory_space<vmem>>, vector<8x8xf32>,
    return
  }
  func.func @transform_0(%arg0: i32) -> (i32, i32, i32) {
    %c0_i32 = arith.constant 0 : i32
    %c0_i32_0 = arith.constant 0 : i32
    %c0_i32_1 = arith.constant 0 : i32
    return %arg0, %c0_i32, %c0_i32_0 : i32, i32, i32
  }
  func.func @transform_1(%arg0: i32) -> (i32, i32) {
    %c0_i32 = arith.constant 0 : i32
    %c0_i32_0 = arith.constant 0 : i32
    return %arg0, %c0_i32 : i32, i32
  }
  func.func @transform_2(%arg0: i32) -> (i32, i32) {
    %c0_i32 = arith.constant 0 : i32
    %c0_i32_0 = arith.constant 0 : i32
    return %arg0, %c0_i32 : i32, i32
  }
  func.func @transform_3(%arg0: i32) -> (i32, i32) {
    %c0_i32 = arith.constant 0 : i32
    %c0_i32_0 = arith.constant 0 : i32
    return %arg0, %c0_i32 : i32, i32
  }
  func.func @transform_4(%arg0: i32) -> (i32, i32) {
    %c0_i32 = arith.constant 0 : i32
    %c0_i32_0 = arith.constant 0 : i32
    %c0_i32_1 = arith.constant 0 : i32
    return %c0_i32, %c0_i32_0 : i32, i32
  }
  func.func @transform_5(%arg0: i32) -> (i32, i32) {
    %c0_i32 = arith.constant 0 : i32
    %c0_i32_0 = arith.constant 0 : i32
    %c0_i32_1 = arith.constant 0 : i32
    return %c0_i32, %c0_i32_0 : i32, i32
  }
  func.func @transform_6(%arg0: i32) -> (i32, i32) {
    %c0_i32 = arith.constant 0 : i32
    %c0_i32_0 = arith.constant 0 : i32
    %c0_i32_1 = arith.constant 0 : i32
    return %c0_i32, %c0_i32_0 : i32, i32
  }
  func.func @transform_7(%arg0: i32) -> (i32, i32) {
    %c0_i32 = arith.constant 0 : i32
    %c0_i32_0 = arith.constant 0 : i32
    %c0_i32_1 = arith.constant 0 : i32
    return %c0_i32, %c0_i32_0 : i32, i32
  }
  func.func @transform_8(%arg0: i32) -> (i32, i32) {
    %c0_i32 = arith.constant 0 : i32
    %c0_i32_0 = arith.constant 0 : i32
    %c0_i32_1 = arith.constant 0 : i32
    return %c0_i32, %c0_i32_0 : i32, i32
  }
  func.func @transform_9(%arg0: i32) -> (i32, i32) {
    %c0_i32 = arith.constant 0 : i32
    %c0_i32_0 = arith.constant 0 : i32
    return %arg0, %c0_i32 : i32, i32
  }
  func.func @transform_10(%arg0: i32) -> (i32, i32) {
    %c0_i32 = arith.constant 0 : i32
    %c0_i32_0 = arith.constant 0 : i32
    return %arg0, %c0_i32 : i32, i32
  }
}

module attributes {stable_mosaic.version = 11 : i64} {
  func.func @_attn_lstm_kernel(%arg0: i32, %arg1: memref<8x8x32xf32, #tpu.memory_space<vmem>>, %arg2: memref<8x32xf32, #tpu.memory_space<vmem>>, %arg3: memref<8x32xf32, #tpu.memory_space<vmem>>, %arg4: memref<8x128xf32, #tpu.memory_space<vmem>>, %arg5: memref<32x32xf32, #tpu.memory_space<vmem>>, %arg6: memref<32x32xf32, #tpu.memory_space<vmem>>, %arg7: memref<2x32xf32, #tpu.memory_space<vmem>>, %arg8: memref<32x128xf32, #tpu.memory_space<vmem>>, %arg9: memref<32x128xf32, #tpu.memory_space<vmem>>, %arg10: memref<8x64xf32, #tpu.memory_space<vmem>>, %arg11: memref<8x8xf32, #tpu.memory_space<vmem>>) attributes {dimension_semantics = [#tpu.dimension_semantics<parallel>], iteration_bounds = array<i64: 1>, scalar_prefetch = 0 : i64, scratch_operands = 0 : i64, tpu.core_type = #tpu.core_type<tc>, window_params = [{transform_indices = @transform_0, window_bounds = array<i64: 8, 8, 32>}, {transform_indices = @transform_1, window_bounds = array<i64: 8, 32>}, {transform_indices = @transform_2, window_bounds = array<i64: 8, 32>}, {transform_indices = @transform_3, window_bounds = array<i64: 8, 128>}, {pipeline_mode = #tpu.pipeline_mode<synchronous>, transform_indices = @transform_4, window_bounds = array<i64: 32, 32>}, {pipeline_mode = #tpu.pipeline_mode<synchronous>, transform_indices = @transform_5, window_bounds = array<i64: 32, 32>}, {pipeline_mode = #tpu.pipeline_mode<synchronous>, transform_indices = @transform_6, window_bounds = array<i64: 2, 32>}, {pipeline_mode = #tpu.pipeline_mode<synchronous>, transform_indices = @transform_7, window_bounds = array<i64: 32, 128>}, {pipeline_mode = #tpu.pipeline_mode<synchronous>, transform_indices = @transform_8, window_bounds = array<i64: 32, 128>}, {transform_indices = @transform_9, window_bounds = array<i64: 8, 64>}, {transform_indices = @transform_10, window_bounds = array<i64: 8, 8>}]} {
    %c0 = arith.constant 0 : index
    %c0_0 = arith.constant 0 : index
    %c0_1 = arith.constant 0 : index
    %0 = vector.load %arg1[%c0, %c0_0, %c0_1] : memref<8x8x32xf32, #tpu.memory_space<vmem>>, vector<8x8x32xf32>
    %c0_2 = arith.constant 0 : index
    %c0_3 = arith.constant 0 : index
    %1 = vector.load %arg2[%c0_2, %c0_3] : memref<8x32xf32, #tpu.memory_space<vmem>>, vector<8x32xf32>
    %c0_4 = arith.constant 0 : index
    %c0_5 = arith.constant 0 : index
    %2 = vector.load %arg3[%c0_4, %c0_5] : memref<8x32xf32, #tpu.memory_space<vmem>>, vector<8x32xf32>
    %c0_6 = arith.constant 0 : index
    %c0_7 = arith.constant 0 : index
    %3 = vector.load %arg7[%c0_6, %c0_7] : memref<2x32xf32, #tpu.memory_space<vmem>>, vector<2x32xf32>
    %4 = vector.shape_cast %0 : vector<8x8x32xf32> to vector<64x32xf32>
    %c0_8 = arith.constant 0 : index
    %c0_9 = arith.constant 0 : index
    %5 = vector.load %arg5[%c0_8, %c0_9] : memref<32x32xf32, #tpu.memory_space<vmem>>, vector<32x32xf32>
    %cst = arith.constant dense<0.000000e+00> : vector<64x32xf32>
    %6 = tpu.matmul %4, %5, %cst {dimension_numbers = #tpu.dot_dimension_numbers<[1], [0], [0], [1], [0, 0, 1, 1], [], []>} : vector<64x32xf32>, vector<32x32xf32>, vector<64x32xf32> -> vector<64x32xf32>
    %c0_10 = arith.constant 0 : index
    %c0_11 = arith.constant 0 : index
    %7 = vector.load %arg6[%c0_10, %c0_11] : memref<32x32xf32, #tpu.memory_space<vmem>>, vector<32x32xf32>
    %cst_12 = arith.constant dense<0.000000e+00> : vector<8x32xf32>
    %8 = tpu.matmul %1, %7, %cst_12 {dimension_numbers = #tpu.dot_dimension_numbers<[1], [0], [0], [1], [0, 0, 1, 1], [], []>} : vector<8x32xf32>, vector<32x32xf32>, vector<8x32xf32> -> vector<8x32xf32>
    %9 = vector.extract_strided_slice %3 {offsets = [0, 0], sizes = [1, 32], strides = [1, 1]} : vector<2x32xf32> to vector<1x32xf32>
    %10 = vector.broadcast %9 : vector<1x32xf32> to vector<8x32xf32>
    %11 = arith.addf %8, %10 : vector<8x32xf32>
    %12 = vector.shape_cast %6 : vector<64x32xf32> to vector<8x8x32xf32>
    %13 = vector.shape_cast %11 : vector<8x32xf32> to vector<8x1x32xf32>
    %14 = vector.broadcast %13 : vector<8x1x32xf32> to vector<8x8x32xf32>
    %15 = arith.addf %12, %14 : vector<8x8x32xf32>
    %16 = math.tanh %15 : vector<8x8x32xf32>
    %17 = vector.extract_strided_slice %3 {offsets = [1, 0], sizes = [1, 32], strides = [1, 1]} : vector<2x32xf32> to vector<1x32xf32>
    %18 = vector.shape_cast %17 : vector<1x32xf32> to vector<1x1x32xf32>
    %19 = vector.broadcast %18 : vector<1x1x32xf32> to vector<8x8x32xf32>
    %20 = arith.mulf %16, %19 : vector<8x8x32xf32>
    %cst_13 = arith.constant dense<0.000000e+00> : vector<8x8xf32>
    %21 = vector.multi_reduction <add>, %20, %cst_13 [2] : vector<8x8x32xf32> to vector<8x8xf32>
    %cst_14 = arith.constant dense<0xFF800000> : vector<8xf32>
    %22 = vector.multi_reduction <maximumf>, %21, %cst_14 [1] : vector<8x8xf32> to vector<8xf32>
    %23 = vector.shape_cast %22 : vector<8xf32> to vector<8x1xf32>
    %24 = vector.broadcast %23 : vector<8x1xf32> to vector<8x8xf32>
    %25 = arith.subf %21, %24 : vector<8x8xf32>
    %26 = math.exp %25 : vector<8x8xf32>
    %cst_15 = arith.constant dense<0.000000e+00> : vector<8xf32>
    %27 = vector.multi_reduction <add>, %26, %cst_15 [1] : vector<8x8xf32> to vector<8xf32>
    %28 = vector.shape_cast %27 : vector<8xf32> to vector<8x1xf32>
    %29 = vector.broadcast %28 : vector<8x1xf32> to vector<8x8xf32>
    %30 = arith.divf %26, %29 : vector<8x8xf32>
    %31 = vector.shape_cast %30 : vector<8x8xf32> to vector<8x8x1xf32>
    %32 = vector.broadcast %31 : vector<8x8x1xf32> to vector<8x8x32xf32>
    %33 = arith.mulf %0, %32 : vector<8x8x32xf32>
    %cst_16 = arith.constant dense<0.000000e+00> : vector<8x32xf32>
    %34 = vector.multi_reduction <add>, %33, %cst_16 [1] : vector<8x8x32xf32> to vector<8x32xf32>
    %c0_17 = arith.constant 0 : index
    %c0_18 = arith.constant 0 : index
    %35 = vector.load %arg8[%c0_17, %c0_18] : memref<32x128xf32, #tpu.memory_space<vmem>>, vector<32x128xf32>
    %cst_19 = arith.constant dense<0.000000e+00> : vector<8x128xf32>
    %36 = tpu.matmul %34, %35, %cst_19 {dimension_numbers = #tpu.dot_dimension_numbers<[1], [0], [0], [1], [0, 0, 1, 1], [], []>} : vector<8x32xf32>, vector<32x128xf32>, vector<8x128xf32> -> vector<8x128xf32>
    %c0_20 = arith.constant 0 : index
    %c0_21 = arith.constant 0 : index
    %37 = vector.load %arg9[%c0_20, %c0_21] : memref<32x128xf32, #tpu.memory_space<vmem>>, vector<32x128xf32>
    %cst_22 = arith.constant dense<0.000000e+00> : vector<8x128xf32>
    %38 = tpu.matmul %1, %37, %cst_22 {dimension_numbers = #tpu.dot_dimension_numbers<[1], [0], [0], [1], [0, 0, 1, 1], [], []>} : vector<8x32xf32>, vector<32x128xf32>, vector<8x128xf32> -> vector<8x128xf32>
    %39 = arith.addf %36, %38 : vector<8x128xf32>
    %c0_23 = arith.constant 0 : index
    %c0_24 = arith.constant 0 : index
    %40 = vector.load %arg4[%c0_23, %c0_24] : memref<8x128xf32, #tpu.memory_space<vmem>>, vector<8x128xf32>
    %41 = arith.addf %39, %40 : vector<8x128xf32>
    %42 = vector.extract_strided_slice %41 {offsets = [0, 0], sizes = [8, 32], strides = [1, 1]} : vector<8x128xf32> to vector<8x32xf32>
    %43 = arith.negf %42 : vector<8x32xf32>
    %44 = math.exp %43 : vector<8x32xf32>
    %cst_25 = arith.constant 1.000000e+00 : f32
    %45 = vector.broadcast %cst_25 : f32 to vector<8x32xf32>
    %46 = arith.addf %45, %44 : vector<8x32xf32>
    %47 = arith.divf %45, %46 : vector<8x32xf32>
    %48 = vector.extract_strided_slice %41 {offsets = [0, 32], sizes = [8, 32], strides = [1, 1]} : vector<8x128xf32> to vector<8x32xf32>
    %49 = arith.negf %48 : vector<8x32xf32>
    %50 = math.exp %49 : vector<8x32xf32>
    %cst_26 = arith.constant 1.000000e+00 : f32
    %51 = vector.broadcast %cst_26 : f32 to vector<8x32xf32>
    %52 = arith.addf %51, %50 : vector<8x32xf32>
    %53 = arith.divf %51, %52 : vector<8x32xf32>
    %54 = vector.extract_strided_slice %41 {offsets = [0, 64], sizes = [8, 32], strides = [1, 1]} : vector<8x128xf32> to vector<8x32xf32>
    %55 = math.tanh %54 : vector<8x32xf32>
    %56 = vector.extract_strided_slice %41 {offsets = [0, 96], sizes = [8, 32], strides = [1, 1]} : vector<8x128xf32> to vector<8x32xf32>
    %57 = arith.negf %56 : vector<8x32xf32>
    %58 = math.exp %57 : vector<8x32xf32>
    %cst_27 = arith.constant 1.000000e+00 : f32
    %59 = vector.broadcast %cst_27 : f32 to vector<8x32xf32>
    %60 = arith.addf %59, %58 : vector<8x32xf32>
    %61 = arith.divf %59, %60 : vector<8x32xf32>
    %62 = arith.mulf %53, %2 : vector<8x32xf32>
    %63 = arith.mulf %47, %55 : vector<8x32xf32>
    %64 = arith.addf %62, %63 : vector<8x32xf32>
    %65 = math.tanh %64 : vector<8x32xf32>
    %66 = arith.mulf %61, %65 : vector<8x32xf32>
    %67 = tpu.concatenate %66, %64 in 1 : vector<8x32xf32>, vector<8x32xf32> -> vector<8x64xf32>
    %c0_28 = arith.constant 0 : index
    %c0_29 = arith.constant 0 : index
    %68 = vector.load %arg10[%c0_28, %c0_29] : memref<8x64xf32, #tpu.memory_space<vmem>>, vector<8x64xf32>
    tpu.vector_store %arg10[%c0_28, %c0_29], %67 {strides = array<i32>} : memref<8x64xf32, #tpu.memory_space<vmem>>, vector<8x64xf32>,
    %c0_30 = arith.constant 0 : index
    %c0_31 = arith.constant 0 : index
    %69 = vector.load %arg11[%c0_30, %c0_31] : memref<8x8xf32, #tpu.memory_space<vmem>>, vector<8x8xf32>
    tpu.vector_store %arg11[%c0_30, %c0_31], %30 {strides = array<i32>} : memref<8x8xf32, #tpu.memory_space<vmem>>, vector<8x8xf32>,
    return
  }
  func.func @transform_0(%arg0: i32) -> (i32, i32, i32) {
    %c0_i32 = arith.constant 0 : i32
    %c0_i32_0 = arith.constant 0 : i32
    %c0_i32_1 = arith.constant 0 : i32
    return %arg0, %c0_i32, %c0_i32_0 : i32, i32, i32
  }
  func.func @transform_1(%arg0: i32) -> (i32, i32) {
    %c0_i32 = arith.constant 0 : i32
    %c0_i32_0 = arith.constant 0 : i32
    return %arg0, %c0_i32 : i32, i32
  }
  func.func @transform_2(%arg0: i32) -> (i32, i32) {
    %c0_i32 = arith.constant 0 : i32
    %c0_i32_0 = arith.constant 0 : i32
    return %arg0, %c0_i32 : i32, i32
  }
  func.func @transform_3(%arg0: i32) -> (i32, i32) {
    %c0_i32 = arith.constant 0 : i32
    %c0_i32_0 = arith.constant 0 : i32
    return %arg0, %c0_i32 : i32, i32
  }
  func.func @transform_4(%arg0: i32) -> (i32, i32) {
    %c0_i32 = arith.constant 0 : i32
    %c0_i32_0 = arith.constant 0 : i32
    %c0_i32_1 = arith.constant 0 : i32
    return %c0_i32, %c0_i32_0 : i32, i32
  }
  func.func @transform_5(%arg0: i32) -> (i32, i32) {
    %c0_i32 = arith.constant 0 : i32
    %c0_i32_0 = arith.constant 0 : i32
    %c0_i32_1 = arith.constant 0 : i32
    return %c0_i32, %c0_i32_0 : i32, i32
  }
  func.func @transform_6(%arg0: i32) -> (i32, i32) {
    %c0_i32 = arith.constant 0 : i32
    %c0_i32_0 = arith.constant 0 : i32
    %c0_i32_1 = arith.constant 0 : i32
    return %c0_i32, %c0_i32_0 : i32, i32
  }
  func.func @transform_7(%arg0: i32) -> (i32, i32) {
    %c0_i32 = arith.constant 0 : i32
    %c0_i32_0 = arith.constant 0 : i32
    %c0_i32_1 = arith.constant 0 : i32
    return %c0_i32, %c0_i32_0 : i32, i32
  }
  func.func @transform_8(%arg0: i32) -> (i32, i32) {
    %c0_i32 = arith.constant 0 : i32
    %c0_i32_0 = arith.constant 0 : i32
    %c0_i32_1 = arith.constant 0 : i32
    return %c0_i32, %c0_i32_0 : i32, i32
  }
  func.func @transform_9(%arg0: i32) -> (i32, i32) {
    %c0_i32 = arith.constant 0 : i32
    %c0_i32_0 = arith.constant 0 : i32
    return %arg0, %c0_i32 : i32, i32
  }
  func.func @transform_10(%arg0: i32) -> (i32, i32) {
    %c0_i32 = arith.constant 0 : i32
    %c0_i32_0 = arith.constant 0 : i32
    return %arg0, %c0_i32 : i32, i32
  }
}

</mosaic_0001>

<llo_original>
// kernel: tpu_custom_call.1
$region0: #{tpu_custom_call.1}
  #allocation0 [shape = 'u32[]', space=smem, size = 0x4, offset = 0x4, fixed_abs, tag = 'smem constant byte address 0x4 - core index']
  #allocation1 [shape = 'u32[72,128]{1,0:T(1,128)}', space=vmem, size = 0x9000, scoped, tag = 'internal scratch']
  %s0 = inlined_call_operand.hbm [shape: f32[8,8,32], index: 0, kind: input, shape index: {}]
  %s1 = inlined_call_operand.hbm [shape: f32[8,32], index: 1, kind: input, shape index: {}]
  %s2 = inlined_call_operand.hbm [shape: f32[8,32], index: 2, kind: input, shape index: {}]
  %s3 = inlined_call_operand.hbm [shape: f32[8,128], index: 3, kind: input, shape index: {}]
  %s4 = inlined_call_operand.hbm [shape: f32[32,32], index: 4, kind: input, shape index: {}]
  %s5 = inlined_call_operand.hbm [shape: f32[32,32], index: 5, kind: input, shape index: {}]
  %s6 = inlined_call_operand.vmem [shape: f32[2,32], index: 6, kind: input, shape index: {}]
  %s7 = inlined_call_operand.hbm [shape: f32[32,128], index: 7, kind: input, shape index: {}]
  %s8 = inlined_call_operand.hbm [shape: f32[32,128], index: 8, kind: input, shape index: {}]
  %s9 = inlined_call_operand.hbm [shape: f32[8,64], index: 9, kind: output, shape index: {0}]
  %s10 = inlined_call_operand.hbm [shape: f32[8,8], index: 10, kind: output, shape index: {1}]
  %11 = xla_tuple %s9, %s10
  %s12 = sld [smem:[#allocation0]]
  $region86: #{tpu_custom_call.1} parent=0
    _
  %s14 = ssub.s32 1, %s12
  %s15 = scalar_select 0, %s14, %s12
  $region1: #{tpu_custom_call.1} parent=0
    #allocation2 [shape = 'u8[32768]{0}', space=vmem, size = 0x8000, scoped, tag = 'input window, operand 0, single buffered']
    #allocation3 [shape = 's32[1]{0}', space=sflag, size = 0x4, scoped, tag = 'scoped memory for tpu_custom_call.1']
    #allocation4 [shape = 's32[1]{0}', space=sflag, size = 0x4, scoped, tag = 'scoped memory for tpu_custom_call.1']
    #allocation5 [shape = 'u8[4096]{0}', space=vmem, size = 0x1000, scoped, tag = 'input window, operand 1, single buffered']
    #allocation6 [shape = 's32[1]{0}', space=sflag, size = 0x4, scoped, tag = 'scoped memory for tpu_custom_call.1']
    #allocation7 [shape = 'u8[4096]{0}', space=vmem, size = 0x1000, scoped, tag = 'input window, operand 2, single buffered']
    #allocation8 [shape = 'u8[4096]{0}', space=vmem, size = 0x1000, scoped, tag = 'input window, operand 3, single buffered']
    #allocation9 [shape = 's32[1]{0}', space=sflag, size = 0x4, scoped, tag = 'scoped memory for tpu_custom_call.1']
    #allocation10 [shape = 'u8[16384]{0}', space=vmem, size = 0x4000, scoped, tag = 'input window, operand 4, single buffered']
    #allocation11 [shape = 'u8[16384]{0}', space=vmem, size = 0x4000, scoped, tag = 'input window, operand 5, single buffered']
    #allocation12 [shape = 's32[1]{0}', space=sflag, size = 0x4, scoped, tag = 'scoped memory for tpu_custom_call.1']
    #allocation13 [shape = 'u8[16384]{0}', space=vmem, size = 0x4000, scoped, tag = 'input window, operand 7, single buffered']
    #allocation14 [shape = 'u8[16384]{0}', space=vmem, size = 0x4000, scoped, tag = 'input window, operand 8, single buffered']
    #allocation15 [shape = 's32[1]{0}', space=sflag, size = 0x4, scoped, tag = 'scoped memory for tpu_custom_call.1']
    #allocation16 [shape = 'u8[4096]{0}', space=vmem, size = 0x1000, scoped, tag = 'output window, operand 0, single buffered']
    #allocation17 [shape = 'u8[4096]{0}', space=vmem, size = 0x1000, scoped, tag = 'output window, operand 1, single buffered']
    #allocation18 [shape = 's32[1]{0}', space=sflag, size = 0x4, scoped, tag = 'scoped memory for tpu_custom_call.1']
    %16 = vsyncpa [#allocation3], 0
    %17 = vsyncpa [#allocation6], 0
    %18 = vsyncpa [#allocation9], 0
    %19 = vsyncpa [#allocation12], 0
    %20 = vsyncpa [#allocation15], 0
    %21 = vsyncpa [#allocation4], 0
    %22 = vsyncpa [#allocation18], 0
    // Predicated region
    $region2: #{tpu_custom_call.1} parent=1 // pred_check
      _
    $region3: #{tpu_custom_call.1} parent=1 // pred_check_branch
      %24 = sbr.rel (0) target = $region5
    $region4: #{tpu_custom_call.1} parent=1 // pred_region
      %26 = vsyncadd [#allocation3], 0
      %s27 = sshll.u32 %s0, 4
      %s28 = int_to_ptr.hbm [resolvable:$true] %s27
      %s29 = sshll.u32 [#allocation2], 4
      %s30 = int_to_ptr.vmem [resolvable:$true] %s29
      %35 = dma.hbm_to_vmem [thread:$0]  %s28, 1024, %s30, [#allocation3], 128, 128, 8
    $region5: #{tpu_custom_call.1} parent=1 // pred_fallthru
      _
    // Predicated region
    $region6: #{tpu_custom_call.1} parent=1 // pred_check
      _
    $region7: #{tpu_custom_call.1} parent=1 // pred_check_branch
      %37 = sbr.rel (0) target = $region9
    $region8: #{tpu_custom_call.1} parent=1 // pred_region
      %39 = vsyncadd [#allocation6], 0
      %s41 = sshll.u32 %s1, 4
      %s42 = int_to_ptr.hbm [resolvable:$true] %s41
      %s43 = sshll.u32 [#allocation5], 4
      %s44 = int_to_ptr.vmem [resolvable:$true] %s43
      %46 = dma.hbm_to_vmem [thread:$0]  %s42, 128, %s44, [#allocation6]
    $region9: #{tpu_custom_call.1} parent=1 // pred_fallthru
      _
    // Predicated region
    $region10: #{tpu_custom_call.1} parent=1 // pred_check
      _
    $region11: #{tpu_custom_call.1} parent=1 // pred_check_branch
      %48 = sbr.rel (0) target = $region13
    $region12: #{tpu_custom_call.1} parent=1 // pred_region
      %50 = vsyncadd [#allocation6], 0
      %s52 = sshll.u32 %s2, 4
      %s53 = int_to_ptr.hbm [resolvable:$true] %s52
      %s54 = sshll.u32 [#allocation7], 4
      %s55 = int_to_ptr.vmem [resolvable:$true] %s54
      %57 = dma.hbm_to_vmem [thread:$0]  %s53, 128, %s55, [#allocation6]
    $region13: #{tpu_custom_call.1} parent=1 // pred_fallthru
      _
    // Predicated region
    $region14: #{tpu_custom_call.1} parent=1 // pred_check
      _
    $region15: #{tpu_custom_call.1} parent=1 // pred_check_branch
      %59 = sbr.rel (0) target = $region17
    $region16: #{tpu_custom_call.1} parent=1 // pred_region
      %61 = vsyncadd [#allocation9], 0
      %s63 = sshll.u32 %s3, 4
      %s64 = int_to_ptr.hbm [resolvable:$true] %s63
      %s65 = sshll.u32 [#allocation8], 4
      %s66 = int_to_ptr.vmem [resolvable:$true] %s65
      %68 = dma.hbm_to_vmem [thread:$0]  %s64, 128, %s66, [#allocation9]
    $region17: #{tpu_custom_call.1} parent=1 // pred_fallthru
      _
    // Predicated region
    $region18: #{tpu_custom_call.1} parent=1 // pred_check
      _
    $region19: #{tpu_custom_call.1} parent=1 // pred_check_branch
      %70 = sbr.rel (0) target = $region21
    $region20: #{tpu_custom_call.1} parent=1 // pred_region
      %72 = vsyncadd [#allocation9], 0
      %s73 = sshll.u32 %s4, 4
      %s74 = int_to_ptr.hbm [resolvable:$true] %s73
      %s75 = sshll.u32 [#allocation10], 4
      %s76 = int_to_ptr.vmem [resolvable:$true] %s75
      %81 = dma.hbm_to_vmem [thread:$0]  %s74, 512, %s76, [#allocation9], 128, 128, 8
    $region21: #{tpu_custom_call.1} parent=1 // pred_fallthru
      _
    // Predicated region
    $region22: #{tpu_custom_call.1} parent=1 // pred_check
      _
    $region23: #{tpu_custom_call.1} parent=1 // pred_check_branch
      %83 = sbr.rel (0) target = $region25
    $region24: #{tpu_custom_call.1} parent=1 // pred_region
      %85 = vsyncadd [#allocation12], 0
      %s86 = sshll.u32 %s5, 4
      %s87 = int_to_ptr.hbm [resolvable:$true] %s86
      %s88 = sshll.u32 [#allocation11], 4
      %s89 = int_to_ptr.vmem [resolvable:$true] %s88
      %94 = dma.hbm_to_vmem [thread:$0]  %s87, 512, %s89, [#allocation12], 128, 128, 8
    $region25: #{tpu_custom_call.1} parent=1 // pred_fallthru
      _
    // Predicated region
    $region26: #{tpu_custom_call.1} parent=1 // pred_check
      _
    $region27: #{tpu_custom_call.1} parent=1 // pred_check_branch
      %96 = sbr.rel (0) target = $region29
    $region28: #{tpu_custom_call.1} parent=1 // pred_region
      _
    $region29: #{tpu_custom_call.1} parent=1 // pred_fallthru
      _
    // Predicated region
    $region30: #{tpu_custom_call.1} parent=1 // pred_check
      _
    $region31: #{tpu_custom_call.1} parent=1 // pred_check_branch
      %98 = sbr.rel (0) target = $region33
    $region32: #{tpu_custom_call.1} parent=1 // pred_region
      %100 = vsyncadd [#allocation12], 0
      %s101 = sshll.u32 %s7, 4
      %s102 = int_to_ptr.hbm [resolvable:$true] %s101
      %s103 = sshll.u32 [#allocation13], 4
      %s104 = int_to_ptr.vmem [resolvable:$true] %s103
      %109 = dma.hbm_to_vmem [thread:$0]  %s102, 512, %s104, [#allocation12], 128, 128, 8
    $region33: #{tpu_custom_call.1} parent=1 // pred_fallthru
      _
    // Predicated region
    $region34: #{tpu_custom_call.1} parent=1 // pred_check
      _
    $region35: #{tpu_custom_call.1} parent=1 // pred_check_branch
      %111 = sbr.rel (0) target = $region37
    $region36: #{tpu_custom_call.1} parent=1 // pred_region
      %113 = vsyncadd [#allocation15], 0
      %s114 = sshll.u32 %s8, 4
      %s115 = int_to_ptr.hbm [resolvable:$true] %s114
      %s116 = sshll.u32 [#allocation14], 4
      %s117 = int_to_ptr.vmem [resolvable:$true] %s116
      %122 = dma.hbm_to_vmem [thread:$0]  %s115, 512, %s117, [#allocation15], 128, 128, 8
    $region37: #{tpu_custom_call.1} parent=1 // pred_fallthru
      _
    // Predicated region
    $region38: #{tpu_custom_call.1} parent=1 // pred_check
      _
    $region39: #{tpu_custom_call.1} parent=1 // pred_check_branch
      %124 = sbr.rel (0) target = $region41
    $region40: #{tpu_custom_call.1} parent=1 // pred_region
      %126 = dma.done [#allocation3], 1024
    $region41: #{tpu_custom_call.1} parent=1 // pred_fallthru
      _
    // Predicated region
    $region42: #{tpu_custom_call.1} parent=1 // pred_check
      _
    $region43: #{tpu_custom_call.1} parent=1 // pred_check_branch
      %128 = sbr.rel (0) target = $region45
    $region44: #{tpu_custom_call.1} parent=1 // pred_region
      %130 = dma.done [#allocation6], 128
    $region45: #{tpu_custom_call.1} parent=1 // pred_fallthru
      _
    // Predicated region
    $region46: #{tpu_custom_call.1} parent=1 // pred_check
      _
    $region47: #{tpu_custom_call.1} parent=1 // pred_check_branch
      %132 = sbr.rel (0) target = $region49
    $region48: #{tpu_custom_call.1} parent=1 // pred_region
      %134 = dma.done [#allocation6], 128
    $region49: #{tpu_custom_call.1} parent=1 // pred_fallthru
      _
    // Predicated region
    $region50: #{tpu_custom_call.1} parent=1 // pred_check
      _
    $region51: #{tpu_custom_call.1} parent=1 // pred_check_branch
      %136 = sbr.rel (0) target = $region53
    $region52: #{tpu_custom_call.1} parent=1 // pred_region
      %138 = dma.done [#allocation9], 128
    $region53: #{tpu_custom_call.1} parent=1 // pred_fallthru
      _
    // Predicated region
    $region54: #{tpu_custom_call.1} parent=1 // pred_check
      _
    $region55: #{tpu_custom_call.1} parent=1 // pred_check_branch
      %140 = sbr.rel (0) target = $region57
    $region56: #{tpu_custom_call.1} parent=1 // pred_region
      %142 = dma.done [#allocation9], 512
    $region57: #{tpu_custom_call.1} parent=1 // pred_fallthru
      _
    // Predicated region
    $region58: #{tpu_custom_call.1} parent=1 // pred_check
      _
    $region59: #{tpu_custom_call.1} parent=1 // pred_check_branch
      %144 = sbr.rel (0) target = $region61
    $region60: #{tpu_custom_call.1} parent=1 // pred_region
      %146 = dma.done [#allocation12], 512
    $region61: #{tpu_custom_call.1} parent=1 // pred_fallthru
      _
    // Predicated region
    $region62: #{tpu_custom_call.1} parent=1 // pred_check
      _
    $region63: #{tpu_custom_call.1} parent=1 // pred_check_branch
      %148 = sbr.rel (0) target = $region65
    $region64: #{tpu_custom_call.1} parent=1 // pred_region
      %150 = dma.done [#allocation12], 512
    $region65: #{tpu_custom_call.1} parent=1 // pred_fallthru
      _
    // Predicated region
    $region66: #{tpu_custom_call.1} parent=1 // pred_check
      _
    $region67: #{tpu_custom_call.1} parent=1 // pred_check_branch
      %152 = sbr.rel (0) target = $region69
    $region68: #{tpu_custom_call.1} parent=1 // pred_region
      %154 = dma.done [#allocation15], 512
    $region69: #{tpu_custom_call.1} parent=1 // pred_fallthru
      _
    %v155 = vld [vmem:[#allocation2] sm:$0xff]
    %v156 = vld [vmem:[#allocation2 + $0x8] sm:$0xff]
    %v157 = vld [vmem:[#allocation2 + $0x10] sm:$0xff]
    %v158 = vld [vmem:[#allocation2 + $0x18] sm:$0xff]
    %v159 = vld [vmem:[#allocation2 + $0x20] sm:$0xff]
    %v160 = vld [vmem:[#allocation2 + $0x28] sm:$0xff]
    %v161 = vld [vmem:[#allocation2 + $0x30] sm:$0xff]
    %v162 = vld [vmem:[#allocation2 + $0x38] sm:$0xff]
    %v163 = vld [vmem:[#allocation5] sm:$0xff]
    %v164 = vld [vmem:[#allocation7] sm:$0xff]
    %v165 = vld [vmem:[%s6] sm:$0x3]
    %v166 = vld [vmem:[#allocation10] sm:$0xff]
    %v167 = vld [vmem:[#allocation10 + $0x8] sm:$0xff]
    %v168 = vld [vmem:[#allocation10 + $0x10] sm:$0xff]
    %v169 = vld [vmem:[#allocation10 + $0x18] sm:$0xff]
    %vm170 = vcmask 261120
    %v172 = vsel %vm170, %v155, 0
    %v175 = vsel %vm170, %v156, 0
    %v178 = vsel %vm170, %v157, 0
    %v181 = vsel %vm170, %v158, 0
    %v184 = vsel %vm170, %v159, 0
    %v187 = vsel %vm170, %v160, 0
    %v190 = vsel %vm170, %v161, 0
    %v193 = vsel %vm170, %v162, 0
    %195 = vmatpush.msra.mxu0 0.0
    %196 = vmatpush.msra.mxu0 0.0
    %197 = vmatpush.msra.mxu0 0.0
    %198 = vmatpush.msra.mxu0 0.0
    %199 = vmatpush.msra.mxu0 0.0
    %200 = vmatpush.msra.mxu0 0.0
    %201 = vmatpush.msra.mxu0 0.0
    %202 = vmatpush.msra.mxu0 0.0
    %203 = vmatpush.msra.mxu0 0.0
    %204 = vmatpush.msra.mxu0 0.0
    %205 = vmatpush.msra.mxu0 0.0
    %206 = vmatpush.msra.mxu0 0.0
    %207 = vmatpush.msra.mxu0 %v169
    %208 = vmatpush.msra.mxu0 %v168
    %209 = vmatpush.msra.mxu0 %v167
    %210 = vmatpush.msra.mxu0 %v166
    %211 = vmatmul.f32.gmra.mxu0 %v172
    %v212 = vpop.f32.mrf.mxu0
    %v213 = vadd.f32 0.0, %v212
    %214 = vmatmul.f32.gmra.mxu0 %v175
    %v215 = vpop.f32.mrf.mxu0
    %v216 = vadd.f32 0.0, %v215
    %217 = vmatmul.f32.gmra.mxu0 %v178
    %v218 = vpop.f32.mrf.mxu0
    %v219 = vadd.f32 0.0, %v218
    %220 = vmatmul.f32.gmra.mxu0 %v181
    %v221 = vpop.f32.mrf.mxu0
    %v222 = vadd.f32 0.0, %v221
    %223 = vmatmul.f32.gmra.mxu0 %v184
    %v224 = vpop.f32.mrf.mxu0
    %v225 = vadd.f32 0.0, %v224
    %226 = vmatmul.f32.gmra.mxu0 %v187
    %v227 = vpop.f32.mrf.mxu0
    %v228 = vadd.f32 0.0, %v227
    %229 = vmatmul.f32.gmra.mxu0 %v190
    %v230 = vpop.f32.mrf.mxu0
    %v231 = vadd.f32 0.0, %v230
    %232 = vmatmul.f32.gmra.mxu0 %v193
    %v233 = vpop.f32.mrf.mxu0
    %v234 = vadd.f32 0.0, %v233
    %235 = vdwg.mxu0
    %v236 = vld [vmem:[#allocation11] sm:$0xff]
    %v237 = vld [vmem:[#allocation11 + $0x8] sm:$0xff]
    %v238 = vld [vmem:[#allocation11 + $0x10] sm:$0xff]
    %v239 = vld [vmem:[#allocation11 + $0x18] sm:$0xff]
    %v240 = vperm.slane %v165, 0
    %v242 = vsel %vm170, %v163, 0
    %244 = vmatpush.msra.mxu0 0.0
    %245 = vmatpush.msra.mxu0 0.0
    %246 = vmatpush.msra.mxu0 0.0
    %247 = vmatpush.msra.mxu0 0.0
    %248 = vmatpush.msra.mxu0 0.0
    %249 = vmatpush.msra.mxu0 0.0
    %250 = vmatpush.msra.mxu0 0.0
    %251 = vmatpush.msra.mxu0 0.0
    %252 = vmatpush.msra.mxu0 0.0
    %253 = vmatpush.msra.mxu0 0.0
    %254 = vmatpush.msra.mxu0 0.0
    %255 = vmatpush.msra.mxu0 0.0
    %256 = vmatpush.msra.mxu0 %v239
    %257 = vmatpush.msra.mxu0 %v238
    %258 = vmatpush.msra.mxu0 %v237
    %259 = vmatpush.msra.mxu0 %v236
    %260 = vmatmul.f32.gmra.mxu0 %v242
    %v261 = vpop.f32.mrf.mxu0
    %v262 = vadd.f32 %v240, %v261
    %263 = vdwg.mxu0
    %v265 = vrot.slane %v262, 1
    %v266 = vrot.slane %v262, 2
    %v267 = vrot.slane %v262, 3
    %v268 = vrot.slane %v262, 4
    %v269 = vrot.slane %v262, 5
    %v270 = vrot.slane %v262, 6
    %v271 = vrot.slane %v262, 7
    %v272 = vperm.slane %v262, 0
    %v273 = vperm.slane %v265, 0
    %v274 = vperm.slane %v266, 0
    %v275 = vperm.slane %v267, 0
    %v276 = vperm.slane %v268, 0
    %v277 = vperm.slane %v269, 0
    %v278 = vperm.slane %v270, 0
    %v279 = vperm.slane %v271, 0
    %v288 = vadd.f32 %v213, %v272
    %v289 = vadd.f32 %v216, %v273
    %v290 = vadd.f32 %v219, %v274
    %v291 = vadd.f32 %v222, %v275
    %v292 = vadd.f32 %v225, %v276
    %v293 = vadd.f32 %v228, %v277
    %v294 = vadd.f32 %v231, %v278
    %v295 = vadd.f32 %v234, %v279
    %v296 = vtanh.pop %v288
    %v297 = vtanh.pop %v289
    %v298 = vtanh.pop %v290
    %v299 = vtanh.pop %v291
    %v300 = vtanh.pop %v292
    %v301 = vtanh.pop %v293
    %v302 = vtanh.pop %v294
    %v303 = vtanh.pop %v295
    %v304 = vperm.slane %v165, 1
    %v305 = vmul.f32 %v296, %v304
    %v306 = vmul.f32 %v297, %v304
    %v307 = vmul.f32 %v298, %v304
    %v308 = vmul.f32 %v299, %v304
    %v309 = vmul.f32 %v300, %v304
    %v310 = vmul.f32 %v301, %v304
    %v311 = vmul.f32 %v302, %v304
    %v312 = vmul.f32 %v303, %v304
    %v313 = vsel %vm170, %v305, 0.0
    %314 = vadd.xlane.f32.xlu0 %v313
    %v315 = vpop.xlane.xlu0 %314
    %v316 = vsel %vm170, %v306, 0.0
    %317 = vadd.xlane.f32.xlu0 %v316
    %v318 = vpop.xlane.xlu0 %317
    %v319 = vsel %vm170, %v307, 0.0
    %320 = vadd.xlane.f32.xlu0 %v319
    %v321 = vpop.xlane.xlu0 %320
    %v322 = vsel %vm170, %v308, 0.0
    %323 = vadd.xlane.f32.xlu0 %v322
    %v324 = vpop.xlane.xlu0 %323
    %v325 = vsel %vm170, %v309, 0.0
    %326 = vadd.xlane.f32.xlu0 %v325
    %v327 = vpop.xlane.xlu0 %326
    %v328 = vsel %vm170, %v310, 0.0
    %329 = vadd.xlane.f32.xlu0 %v328
    %v330 = vpop.xlane.xlu0 %329
    %v331 = vsel %vm170, %v311, 0.0
    %332 = vadd.xlane.f32.xlu0 %v331
    %v333 = vpop.xlane.xlu0 %332
    %v334 = vsel %vm170, %v312, 0.0
    %335 = vadd.xlane.f32.xlu0 %v334
    %v336 = vpop.xlane.xlu0 %335
    %v345 = vlaneseq
    %v346 = vand.u32 %v345, 127
    %v347 = vperm.slane %v315, %v346
    %v348 = vperm.slane %v318, %v346
    %v349 = vperm.slane %v321, %v346
    %v350 = vperm.slane %v324, %v346
    %v351 = vperm.slane %v327, %v346
    %v352 = vperm.slane %v330, %v346
    %v353 = vperm.slane %v333, %v346
    %v354 = vperm.slane %v336, %v346
    %vm355 = vcmask 1041409
    %v356 = vsel %vm355, %v348, %v347
    %vm357 = vcmask 1042434
    %v358 = vsel %vm357, %v349, %v356
    %vm359 = vcmask 1043459
    %v360 = vsel %vm359, %v350, %v358
    %vm361 = vcmask 1044484
    %v362 = vsel %vm361, %v351, %v360
    %vm363 = vcmask 1045509
    %v364 = vsel %vm363, %v352, %v362
    %vm365 = vcmask 1046534
    %v366 = vsel %vm365, %v353, %v364
    %vm367 = vcmask 1047559
    %v368 = vsel %vm367, %v354, %v366
    %vm370 = vcmask 64512
    %v371 = vsel %vm370, %v368, -inf
    %372 = vmax.xlane.f32.xlu0 %v371
    %v373 = vpop.xlane.xlu0 %372
    %v375 = vperm.slane %v373, 0
    %v376 = vperm.slane %v373, 1
    %v377 = vperm.slane %v373, 2
    %v378 = vperm.slane %v373, 3
    %v379 = vperm.slane %v373, 4
    %v380 = vperm.slane %v373, 5
    %v381 = vperm.slane %v373, 6
    %v382 = vperm.slane %v373, 7
    %v391 = vsub.f32 %v315, %v375
    %v392 = vsub.f32 %v318, %v376
    %v393 = vsub.f32 %v321, %v377
    %v394 = vsub.f32 %v324, %v378
    %v395 = vsub.f32 %v327, %v379
    %v396 = vsub.f32 %v330, %v380
    %v397 = vsub.f32 %v333, %v381
    %v398 = vsub.f32 %v336, %v382
    %v399 = vmul.f32 %v391, 1.442695
    %v400 = vpow.pop %v399
    %v401 = vmul.f32 %v392, 1.442695
    %v402 = vpow.pop %v401
    %v403 = vmul.f32 %v393, 1.442695
    %v404 = vpow.pop %v403
    %v405 = vmul.f32 %v394, 1.442695
    %v406 = vpow.pop %v405
    %v407 = vmul.f32 %v395, 1.442695
    %v408 = vpow.pop %v407
    %v409 = vmul.f32 %v396, 1.442695
    %v410 = vpow.pop %v409
    %v411 = vmul.f32 %v397, 1.442695
    %v412 = vpow.pop %v411
    %v413 = vmul.f32 %v398, 1.442695
    %v414 = vpow.pop %v413
    %423 = vset.pattern.permute.xlu0 0
    %424 = vperm.xlu0 %423, %v400
    %v425 = vpop.permute.xlu0 %424
    %426 = vset.pattern.permute.xlu0 0
    %427 = vperm.xlu0 %426, %v402
    %v428 = vpop.permute.xlu0 %427
    %429 = vset.pattern.permute.xlu0 0
    %430 = vperm.xlu0 %429, %v404
    %v431 = vpop.permute.xlu0 %430
    %432 = vset.pattern.permute.xlu0 0
    %433 = vperm.xlu0 %432, %v406
    %v434 = vpop.permute.xlu0 %433
    %435 = vset.pattern.permute.xlu0 0
    %436 = vperm.xlu0 %435, %v408
    %v437 = vpop.permute.xlu0 %436
    %438 = vset.pattern.permute.xlu0 0
    %439 = vperm.xlu0 %438, %v410
    %v440 = vpop.permute.xlu0 %439
    %441 = vset.pattern.permute.xlu0 0
    %442 = vperm.xlu0 %441, %v412
    %v443 = vpop.permute.xlu0 %442
    %444 = vset.pattern.permute.xlu0 0
    %445 = vperm.xlu0 %444, %v414
    %v446 = vpop.permute.xlu0 %445
    %v447 = vperm.slane %v425, %v346
    %v448 = vperm.slane %v428, %v346
    %v449 = vperm.slane %v431, %v346
    %v450 = vperm.slane %v434, %v346
    %v451 = vperm.slane %v437, %v346
    %v452 = vperm.slane %v440, %v346
    %v453 = vperm.slane %v443, %v346
    %v454 = vperm.slane %v446, %v346
    %v455 = vsel %vm355, %v448, %v447
    %v456 = vsel %vm357, %v449, %v455
    %v457 = vsel %vm359, %v450, %v456
    %v458 = vsel %vm361, %v451, %v457
    %v459 = vsel %vm363, %v452, %v458
    %v460 = vsel %vm365, %v453, %v459
    %v461 = vsel %vm367, %v454, %v460
    %v463 = vsel %vm370, %v461, 0.0
    %464 = vadd.xlane.f32.xlu0 %v463
    %v465 = vpop.xlane.xlu0 %464
    %v467 = vperm.slane %v465, 0
    %v468 = vperm.slane %v465, 1
    %v469 = vperm.slane %v465, 2
    %v470 = vperm.slane %v465, 3
    %v471 = vperm.slane %v465, 4
    %v472 = vperm.slane %v465, 5
    %v473 = vperm.slane %v465, 6
    %v474 = vperm.slane %v465, 7
    %v483 = vrcp.pop %v467
    %v484 = vmul.f32 %v467, %v483
    %v485 = vsub.f32 1.0, %v484
    %v486 = vmul.f32 %v483, %v485
    %v487 = vadd.f32 %v483, %v486
    %vm488 = vweird.f32 %v467
    %vm489 = vweird.f32 %v483
    %vm490 = vmor %vm488, %vm489
    %v491 = vsel %vm490, %v483, %v487
    %v492 = vand.u32 2147483647, %v467
    %vm493 = vcmp.eq.f32.partialorder %v492, 8.507059e+37
    %v494 = vand.u32 %v467, 2147483648
    %v495 = vor.u32 1.1754944e-38, %v494
    %v496 = vsel %vm493, %v495, %v491
    %v497 = vmul.f32 %v400, %v496
    %v498 = vrcp.pop %v468
    %v499 = vmul.f32 %v468, %v498
    %v500 = vsub.f32 1.0, %v499
    %v501 = vmul.f32 %v498, %v500
    %v502 = vadd.f32 %v498, %v501
    %vm503 = vweird.f32 %v468
    %vm504 = vweird.f32 %v498
    %vm505 = vmor %vm503, %vm504
    %v506 = vsel %vm505, %v498, %v502
    %v507 = vand.u32 2147483647, %v468
    %vm508 = vcmp.eq.f32.partialorder %v507, 8.507059e+37
    %v509 = vand.u32 %v468, 2147483648
    %v510 = vor.u32 1.1754944e-38, %v509
    %v511 = vsel %vm508, %v510, %v506
    %v512 = vmul.f32 %v402, %v511
    %v513 = vrcp.pop %v469
    %v514 = vmul.f32 %v469, %v513
    %v515 = vsub.f32 1.0, %v514
    %v516 = vmul.f32 %v513, %v515
    %v517 = vadd.f32 %v513, %v516
    %vm518 = vweird.f32 %v469
    %vm519 = vweird.f32 %v513
    %vm520 = vmor %vm518, %vm519
    %v521 = vsel %vm520, %v513, %v517
    %v522 = vand.u32 2147483647, %v469
    %vm523 = vcmp.eq.f32.partialorder %v522, 8.507059e+37
    %v524 = vand.u32 %v469, 2147483648
    %v525 = vor.u32 1.1754944e-38, %v524
    %v526 = vsel %vm523, %v525, %v521
    %v527 = vmul.f32 %v404, %v526
    %v528 = vrcp.pop %v470
    %v529 = vmul.f32 %v470, %v528
    %v530 = vsub.f32 1.0, %v529
    %v531 = vmul.f32 %v528, %v530
    %v532 = vadd.f32 %v528, %v531
    %vm533 = vweird.f32 %v470
    %vm534 = vweird.f32 %v528
    %vm535 = vmor %vm533, %vm534
    %v536 = vsel %vm535, %v528, %v532
    %v537 = vand.u32 2147483647, %v470
    %vm538 = vcmp.eq.f32.partialorder %v537, 8.507059e+37
    %v539 = vand.u32 %v470, 2147483648
    %v540 = vor.u32 1.1754944e-38, %v539
    %v541 = vsel %vm538, %v540, %v536
    %v542 = vmul.f32 %v406, %v541
    %v543 = vrcp.pop %v471
    %v544 = vmul.f32 %v471, %v543
    %v545 = vsub.f32 1.0, %v544
    %v546 = vmul.f32 %v543, %v545
    %v547 = vadd.f32 %v543, %v546
    %vm548 = vweird.f32 %v471
    %vm549 = vweird.f32 %v543
    %vm550 = vmor %vm548, %vm549
    %v551 = vsel %vm550, %v543, %v547
    %v552 = vand.u32 2147483647, %v471
    %vm553 = vcmp.eq.f32.partialorder %v552, 8.507059e+37
    %v554 = vand.u32 %v471, 2147483648
    %v555 = vor.u32 1.1754944e-38, %v554
    %v556 = vsel %vm553, %v555, %v551
    %v557 = vmul.f32 %v408, %v556
    %v558 = vrcp.pop %v472
    %v559 = vmul.f32 %v472, %v558
    %v560 = vsub.f32 1.0, %v559
    %v561 = vmul.f32 %v558, %v560
    %v562 = vadd.f32 %v558, %v561
    %vm563 = vweird.f32 %v472
    %vm564 = vweird.f32 %v558
    %vm565 = vmor %vm563, %vm564
    %v566 = vsel %vm565, %v558, %v562
    %v567 = vand.u32 2147483647, %v472
    %vm568 = vcmp.eq.f32.partialorder %v567, 8.507059e+37
    %v569 = vand.u32 %v472, 2147483648
    %v570 = vor.u32 1.1754944e-38, %v569
    %v571 = vsel %vm568, %v570, %v566
    %v572 = vmul.f32 %v410, %v571
    %v573 = vrcp.pop %v473
    %v574 = vmul.f32 %v473, %v573
    %v575 = vsub.f32 1.0, %v574
    %v576 = vmul.f32 %v573, %v575
    %v577 = vadd.f32 %v573, %v576
    %vm578 = vweird.f32 %v473
    %vm579 = vweird.f32 %v573
    %vm580 = vmor %vm578, %vm579
    %v581 = vsel %vm580, %v573, %v577
    %v582 = vand.u32 2147483647, %v473
    %vm583 = vcmp.eq.f32.partialorder %v582, 8.507059e+37
    %v584 = vand.u32 %v473, 2147483648
    %v585 = vor.u32 1.1754944e-38, %v584
    %v586 = vsel %vm583, %v585, %v581
    %v587 = vmul.f32 %v412, %v586
    %v588 = vrcp.pop %v474
    %v589 = vmul.f32 %v474, %v588
    %v590 = vsub.f32 1.0, %v589
    %v591 = vmul.f32 %v588, %v590
    %v592 = vadd.f32 %v588, %v591
    %vm593 = vweird.f32 %v474
    %vm594 = vweird.f32 %v588
    %vm595 = vmor %vm593, %vm594
    %v596 = vsel %vm595, %v588, %v592
    %v597 = vand.u32 2147483647, %v474
    %vm598 = vcmp.eq.f32.partialorder %v597, 8.507059e+37
    %v599 = vand.u32 %v474, 2147483648
    %v600 = vor.u32 1.1754944e-38, %v599
    %v601 = vsel %vm598, %v600, %v596
    %v602 = vmul.f32 %v414, %v601
    %604 = vset.pattern.permute.xlu0 0
    %605 = vperm.xlu0 %604, %v497
    %v606 = vpop.permute.xlu0 %605
    %609 = vset.pattern.permute.xlu0 0
    %610 = vperm.xlu0 %609, %v512
    %v611 = vpop.permute.xlu0 %610
    %614 = vset.pattern.permute.xlu0 0
    %615 = vperm.xlu0 %614, %v527
    %v616 = vpop.permute.xlu0 %615
    %619 = vset.pattern.permute.xlu0 0
    %620 = vperm.xlu0 %619, %v542
    %v621 = vpop.permute.xlu0 %620
    %624 = vset.pattern.permute.xlu0 0
    %625 = vperm.xlu0 %624, %v557
    %v626 = vpop.permute.xlu0 %625
    %629 = vset.pattern.permute.xlu0 0
    %630 = vperm.xlu0 %629, %v572
    %v631 = vpop.permute.xlu0 %630
    %634 = vset.pattern.permute.xlu0 0
    %635 = vperm.xlu0 %634, %v587
    %v636 = vpop.permute.xlu0 %635
    %639 = vset.pattern.permute.xlu0 0
    %640 = vperm.xlu0 %639, %v602
    %v641 = vpop.permute.xlu0 %640
    %v643 = vmul.f32 %v155, %v606
    %v644 = vmul.f32 %v156, %v611
    %v645 = vmul.f32 %v157, %v616
    %v646 = vmul.f32 %v158, %v621
    %v647 = vmul.f32 %v159, %v626
    %v648 = vmul.f32 %v160, %v631
    %v649 = vmul.f32 %v161, %v636
    %v650 = vmul.f32 %v162, %v641
    %v651 = vsel %vm170, %v643, 0.0
    %v652 = vrot.slane %v651, 4
    %v653 = vadd.f32 %v651, %v652
    %v654 = vrot.slane %v653, 2
    %v655 = vadd.f32 %v653, %v654
    %v656 = vrot.slane %v655, 1
    %v657 = vadd.f32 %v655, %v656
    %v658 = vsel %vm170, %v644, 0.0
    %v659 = vrot.slane %v658, 4
    %v660 = vadd.f32 %v658, %v659
    %v661 = vrot.slane %v660, 2
    %v662 = vadd.f32 %v660, %v661
    %v663 = vrot.slane %v662, 1
    %v664 = vadd.f32 %v662, %v663
    %v665 = vsel %vm170, %v645, 0.0
    %v666 = vrot.slane %v665, 4
    %v667 = vadd.f32 %v665, %v666
    %v668 = vrot.slane %v667, 2
    %v669 = vadd.f32 %v667, %v668
    %v670 = vrot.slane %v669, 1
    %v671 = vadd.f32 %v669, %v670
    %v672 = vsel %vm170, %v646, 0.0
    %v673 = vrot.slane %v672, 4
    %v674 = vadd.f32 %v672, %v673
    %v675 = vrot.slane %v674, 2
    %v676 = vadd.f32 %v674, %v675
    %v677 = vrot.slane %v676, 1
    %v678 = vadd.f32 %v676, %v677
    %v679 = vsel %vm170, %v647, 0.0
    %v680 = vrot.slane %v679, 4
    %v681 = vadd.f32 %v679, %v680
    %v682 = vrot.slane %v681, 2
    %v683 = vadd.f32 %v681, %v682
    %v684 = vrot.slane %v683, 1
    %v685 = vadd.f32 %v683, %v684
    %v686 = vsel %vm170, %v648, 0.0
    %v687 = vrot.slane %v686, 4
    %v688 = vadd.f32 %v686, %v687
    %v689 = vrot.slane %v688, 2
    %v690 = vadd.f32 %v688, %v689
    %v691 = vrot.slane %v690, 1
    %v692 = vadd.f32 %v690, %v691
    %v693 = vsel %vm170, %v649, 0.0
    %v694 = vrot.slane %v693, 4
    %v695 = vadd.f32 %v693, %v694
    %v696 = vrot.slane %v695, 2
    %v697 = vadd.f32 %v695, %v696
    %v698 = vrot.slane %v697, 1
    %v699 = vadd.f32 %v697, %v698
    %v700 = vsel %vm170, %v650, 0.0
    %v701 = vrot.slane %v700, 4
    %v702 = vadd.f32 %v700, %v701
    %v703 = vrot.slane %v702, 2
    %v704 = vadd.f32 %v702, %v703
    %v705 = vrot.slane %v704, 1
    %v706 = vadd.f32 %v704, %v705
    %v707 = vld [vmem:[#allocation13] sm:$0xff]
    %v708 = vld [vmem:[#allocation13 + $0x8] sm:$0xff]
    %v709 = vld [vmem:[#allocation13 + $0x10] sm:$0xff]
    %v710 = vld [vmem:[#allocation13 + $0x18] sm:$0xff]
    %v711 = vld [vmem:[#allocation14] sm:$0xff]
    %v712 = vld [vmem:[#allocation14 + $0x8] sm:$0xff]
    %v713 = vld [vmem:[#allocation14 + $0x10] sm:$0xff]
    %v714 = vld [vmem:[#allocation14 + $0x18] sm:$0xff]
    %715 = vmatpush.msra.mxu0 0.0
    %716 = vmatpush.msra.mxu0 0.0
    %717 = vmatpush.msra.mxu0 0.0
    %718 = vmatpush.msra.mxu0 0.0
    %719 = vmatpush.msra.mxu0 0.0
    %720 = vmatpush.msra.mxu0 0.0
    %721 = vmatpush.msra.mxu0 0.0
    %722 = vmatpush.msra.mxu0 0.0
    %723 = vmatpush.msra.mxu0 0.0
    %724 = vmatpush.msra.mxu0 0.0
    %725 = vmatpush.msra.mxu0 0.0
    %726 = vmatpush.msra.mxu0 0.0
    %727 = vmatpush.msra.mxu0 %v714
    %728 = vmatpush.msra.mxu0 %v713
    %729 = vmatpush.msra.mxu0 %v712
    %730 = vmatpush.msra.mxu0 %v711
    %731 = vmatmul.f32.gmra.mxu0 %v242
    %v732 = vpop.f32.mrf.mxu0
    %v733 = vadd.f32 0.0, %v732
    %734 = vdwg.mxu0
    %v743 = vsel %vm355, %v664, %v657
    %v744 = vsel %vm357, %v671, %v743
    %v745 = vsel %vm359, %v678, %v744
    %v746 = vsel %vm361, %v685, %v745
    %v747 = vsel %vm363, %v692, %v746
    %v748 = vsel %vm365, %v699, %v747
    %v749 = vsel %vm367, %v706, %v748
    %v750 = vsel %vm170, %v749, 0
    %752 = vmatpush.msra.mxu0 0.0
    %753 = vmatpush.msra.mxu0 0.0
    %754 = vmatpush.msra.mxu0 0.0
    %755 = vmatpush.msra.mxu0 0.0
    %756 = vmatpush.msra.mxu0 0.0
    %757 = vmatpush.msra.mxu0 0.0
    %758 = vmatpush.msra.mxu0 0.0
    %759 = vmatpush.msra.mxu0 0.0
    %760 = vmatpush.msra.mxu0 0.0
    %761 = vmatpush.msra.mxu0 0.0
    %762 = vmatpush.msra.mxu0 0.0
    %763 = vmatpush.msra.mxu0 0.0
    %764 = vmatpush.msra.mxu0 %v710
    %765 = vmatpush.msra.mxu0 %v709
    %766 = vmatpush.msra.mxu0 %v708
    %767 = vmatpush.msra.mxu0 %v707
    %768 = vmatmul.f32.gmra.mxu0 %v750
    %v769 = vpop.f32.mrf.mxu0
    %v770 = vadd.f32 %v733, %v769
    %771 = vdwg.mxu0
    %v772 = vld [vmem:[#allocation8] sm:$0xff]
    %v773 = vadd.f32 %v770, %v772
    %v774 = vxor.u32 %v773, 2147483648
    %v775 = vmul.f32 %v774, 1.442695
    %v776 = vpow.pop %v775
    %v777 = vadd.f32 %v776, 1.0
    %v778 = vrcp.pop %v777
    %v779 = vmul.f32 %v777, %v778
    %v780 = vsub.f32 1.0, %v779
    %v781 = vmul.f32 %v778, %v780
    %v782 = vadd.f32 %v778, %v781
    %vm783 = vweird.f32 %v777
    %vm784 = vweird.f32 %v778
    %vm785 = vmor %vm783, %vm784
    %v786 = vsel %vm785, %v778, %v782
    %v787 = vand.u32 2147483647, %v777
    %vm788 = vcmp.eq.f32.partialorder %v787, 8.507059e+37
    %v789 = vand.u32 %v777, 2147483648
    %v790 = vor.u32 1.1754944e-38, %v789
    %v791 = vsel %vm788, %v790, %v786
    %v792 = vmul.f32 1.0, %v791
    %v793 = vtanh.pop %v773
    %795 = vrot.lane.b32.xlu0 %v164, 32
    %v796 = vpop.permute.xlu0 %795
    %v798 = vmul.f32 %v792, %v796
    %800 = vrot.lane.b32.xlu0 %v793, 64
    %v801 = vpop.permute.xlu0 %800
    %v803 = vmul.f32 %v792, %v801
    %805 = vrot.lane.b32.xlu0 %v803, 32
    %v806 = vpop.permute.xlu0 %805
    %v808 = vadd.f32 %v798, %v806
    %v809 = vtanh.pop %v808
    %811 = vrot.lane.b32.xlu0 %v809, 64
    %v812 = vpop.permute.xlu0 %811
    %v814 = vmul.f32 %v792, %v812
    %816 = vrot.lane.b32.xlu0 %v814, 32
    %v817 = vpop.permute.xlu0 %816
    %v819 = vsel %vm170, %v817, %v808
    %vm820 = vcmask 523264
    %821 = vst.msk [vmem:[#allocation16] sm:$0xff] %vm820, %v819
    %v822 = vperm.slane %v606, %v346
    %v823 = vperm.slane %v611, %v346
    %v824 = vperm.slane %v616, %v346
    %v825 = vperm.slane %v621, %v346
    %v826 = vperm.slane %v626, %v346
    %v827 = vperm.slane %v631, %v346
    %v828 = vperm.slane %v636, %v346
    %v829 = vperm.slane %v641, %v346
    %v830 = vsel %vm355, %v823, %v822
    %v831 = vsel %vm357, %v824, %v830
    %v832 = vsel %vm359, %v825, %v831
    %v833 = vsel %vm361, %v826, %v832
    %v834 = vsel %vm363, %v827, %v833
    %v835 = vsel %vm365, %v828, %v834
    %v836 = vsel %vm367, %v829, %v835
    %838 = vst.msk [vmem:[#allocation17] sm:$0xff] %vm370, %v836
    // Predicated region
    $region70: #{tpu_custom_call.1} parent=1 // pred_check
      _
    $region71: #{tpu_custom_call.1} parent=1 // pred_check_branch
      %840 = sbr.rel (0) target = $region73
    $region72: #{tpu_custom_call.1} parent=1 // pred_region
      %842 = vsyncadd [#allocation4], 0
      %s844 = sshll.u32 [#allocation16], 4
      %s845 = int_to_ptr.vmem [resolvable:$true] %s844
      %s846 = sshll.u32 %s9, 4
      %s847 = int_to_ptr.hbm [resolvable:$true] %s846
      %849 = dma.vmem_to_hbm [thread:$0]  %s845, 128, %s847, [#allocation4]
    $region73: #{tpu_custom_call.1} parent=1 // pred_fallthru
      _
    // Predicated region
    $region74: #{tpu_custom_call.1} parent=1 // pred_check
      _
    $region75: #{tpu_custom_call.1} parent=1 // pred_check_branch
      %851 = sbr.rel (0) target = $region77
    $region76: #{tpu_custom_call.1} parent=1 // pred_region
      %853 = vsyncadd [#allocation18], 0
      %s855 = sshll.u32 [#allocation17], 4
      %s856 = int_to_ptr.vmem [resolvable:$true] %s855
      %s857 = sshll.u32 %s10, 4
      %s858 = int_to_ptr.hbm [resolvable:$true] %s857
      %860 = dma.vmem_to_hbm [thread:$0]  %s856, 128, %s858, [#allocation18]
    $region77: #{tpu_custom_call.1} parent=1 // pred_fallthru
      _
    // Predicated region
    $region78: #{tpu_custom_call.1} parent=1 // pred_check
      _
    $region79: #{tpu_custom_call.1} parent=1 // pred_check_branch
      %862 = sbr.rel (0) target = $region81
    $region80: #{tpu_custom_call.1} parent=1 // pred_region
      %864 = dma.done [#allocation4], 128
    $region81: #{tpu_custom_call.1} parent=1 // pred_fallthru
      _
    // Predicated region
    $region82: #{tpu_custom_call.1} parent=1 // pred_check
      _
    $region83: #{tpu_custom_call.1} parent=1 // pred_check_branch
      %866 = sbr.rel (0) target = $region85
    $region84: #{tpu_custom_call.1} parent=1 // pred_region
      %868 = dma.done [#allocation18], 128
    $region85: #{tpu_custom_call.1} parent=1 // pred_fallthru
      _
    %869 = vsyncpa [#allocation3], 1
    %870 = vsyncpa [#allocation6], 1
    %871 = vsyncpa [#allocation9], 1
    %872 = vsyncpa [#allocation12], 1
    %873 = vsyncpa [#allocation15], 1
    %874 = vsyncpa [#allocation4], 1
    %875 = vsyncpa [#allocation18], 1

// kernel: tpu_custom_call.1
$region0: #{tpu_custom_call.1}
  #allocation0 [shape = 'u32[]', space=smem, size = 0x4, offset = 0x4, fixed_abs, tag = 'smem constant byte address 0x4 - core index']
  #allocation1 [shape = 'u32[72,128]{1,0:T(1,128)}', space=vmem, size = 0x9000, scoped, tag = 'internal scratch']
  %s0 = inlined_call_operand.hbm [shape: f32[8,8,32], index: 0, kind: input, shape index: {}]
  %s1 = inlined_call_operand.hbm [shape: f32[8,32], index: 1, kind: input, shape index: {}]
  %s2 = inlined_call_operand.hbm [shape: f32[8,32], index: 2, kind: input, shape index: {}]
  %s3 = inlined_call_operand.hbm [shape: f32[8,128], index: 3, kind: input, shape index: {}]
  %s4 = inlined_call_operand.hbm [shape: f32[32,32], index: 4, kind: input, shape index: {}]
  %s5 = inlined_call_operand.hbm [shape: f32[32,32], index: 5, kind: input, shape index: {}]
  %s6 = inlined_call_operand.vmem [shape: f32[2,32], index: 6, kind: input, shape index: {}]
  %s7 = inlined_call_operand.hbm [shape: f32[32,128], index: 7, kind: input, shape index: {}]
  %s8 = inlined_call_operand.hbm [shape: f32[32,128], index: 8, kind: input, shape index: {}]
  %s9 = inlined_call_operand.hbm [shape: f32[8,64], index: 9, kind: output, shape index: {0}]
  %s10 = inlined_call_operand.hbm [shape: f32[8,8], index: 10, kind: output, shape index: {1}]
  %11 = xla_tuple %s9, %s10
  %s12 = sld [smem:[#allocation0]]
  $region86: #{tpu_custom_call.1} parent=0
    _
  %s14 = ssub.s32 1, %s12
  %s15 = scalar_select 0, %s14, %s12
  $region1: #{tpu_custom_call.1} parent=0
    #allocation2 [shape = 'u8[32768]{0}', space=vmem, size = 0x8000, scoped, tag = 'input window, operand 0, single buffered']
    #allocation3 [shape = 's32[1]{0}', space=sflag, size = 0x4, scoped, tag = 'scoped memory for tpu_custom_call.1']
    #allocation4 [shape = 's32[1]{0}', space=sflag, size = 0x4, scoped, tag = 'scoped memory for tpu_custom_call.1']
    #allocation5 [shape = 'u8[4096]{0}', space=vmem, size = 0x1000, scoped, tag = 'input window, operand 1, single buffered']
    #allocation6 [shape = 's32[1]{0}', space=sflag, size = 0x4, scoped, tag = 'scoped memory for tpu_custom_call.1']
    #allocation7 [shape = 'u8[4096]{0}', space=vmem, size = 0x1000, scoped, tag = 'input window, operand 2, single buffered']
    #allocation8 [shape = 'u8[4096]{0}', space=vmem, size = 0x1000, scoped, tag = 'input window, operand 3, single buffered']
    #allocation9 [shape = 's32[1]{0}', space=sflag, size = 0x4, scoped, tag = 'scoped memory for tpu_custom_call.1']
    #allocation10 [shape = 'u8[16384]{0}', space=vmem, size = 0x4000, scoped, tag = 'input window, operand 4, single buffered']
    #allocation11 [shape = 'u8[16384]{0}', space=vmem, size = 0x4000, scoped, tag = 'input window, operand 5, single buffered']
    #allocation12 [shape = 's32[1]{0}', space=sflag, size = 0x4, scoped, tag = 'scoped memory for tpu_custom_call.1']
    #allocation13 [shape = 'u8[16384]{0}', space=vmem, size = 0x4000, scoped, tag = 'input window, operand 7, single buffered']
    #allocation14 [shape = 'u8[16384]{0}', space=vmem, size = 0x4000, scoped, tag = 'input window, operand 8, single buffered']
    #allocation15 [shape = 's32[1]{0}', space=sflag, size = 0x4, scoped, tag = 'scoped memory for tpu_custom_call.1']
    #allocation16 [shape = 'u8[4096]{0}', space=vmem, size = 0x1000, scoped, tag = 'output window, operand 0, single buffered']
    #allocation17 [shape = 'u8[4096]{0}', space=vmem, size = 0x1000, scoped, tag = 'output window, operand 1, single buffered']
    #allocation18 [shape = 's32[1]{0}', space=sflag, size = 0x4, scoped, tag = 'scoped memory for tpu_custom_call.1']
    %16 = vsyncpa [#allocation3], 0
    %17 = vsyncpa [#allocation6], 0
    %18 = vsyncpa [#allocation9], 0
    %19 = vsyncpa [#allocation12], 0
    %20 = vsyncpa [#allocation15], 0
    %21 = vsyncpa [#allocation4], 0
    %22 = vsyncpa [#allocation18], 0
    // Predicated region
    $region2: #{tpu_custom_call.1} parent=1 // pred_check
      _
    $region3: #{tpu_custom_call.1} parent=1 // pred_check_branch
      %24 = sbr.rel (0) target = $region5
    $region4: #{tpu_custom_call.1} parent=1 // pred_region
      %26 = vsyncadd [#allocation3], 0
      %s27 = sshll.u32 %s0, 4
      %s28 = int_to_ptr.hbm [resolvable:$true] %s27
      %s29 = sshll.u32 [#allocation2], 4
      %s30 = int_to_ptr.vmem [resolvable:$true] %s29
      %35 = dma.hbm_to_vmem [thread:$0]  %s28, 1024, %s30, [#allocation3], 128, 128, 8
    $region5: #{tpu_custom_call.1} parent=1 // pred_fallthru
      _
    // Predicated region
    $region6: #{tpu_custom_call.1} parent=1 // pred_check
      _
    $region7: #{tpu_custom_call.1} parent=1 // pred_check_branch
      %37 = sbr.rel (0) target = $region9
    $region8: #{tpu_custom_call.1} parent=1 // pred_region
      %39 = vsyncadd [#allocation6], 0
      %s41 = sshll.u32 %s1, 4
      %s42 = int_to_ptr.hbm [resolvable:$true] %s41
      %s43 = sshll.u32 [#allocation5], 4
      %s44 = int_to_ptr.vmem [resolvable:$true] %s43
      %46 = dma.hbm_to_vmem [thread:$0]  %s42, 128, %s44, [#allocation6]
    $region9: #{tpu_custom_call.1} parent=1 // pred_fallthru
      _
    // Predicated region
    $region10: #{tpu_custom_call.1} parent=1 // pred_check
      _
    $region11: #{tpu_custom_call.1} parent=1 // pred_check_branch
      %48 = sbr.rel (0) target = $region13
    $region12: #{tpu_custom_call.1} parent=1 // pred_region
      %50 = vsyncadd [#allocation6], 0
      %s52 = sshll.u32 %s2, 4
      %s53 = int_to_ptr.hbm [resolvable:$true] %s52
      %s54 = sshll.u32 [#allocation7], 4
      %s55 = int_to_ptr.vmem [resolvable:$true] %s54
      %57 = dma.hbm_to_vmem [thread:$0]  %s53, 128, %s55, [#allocation6]
    $region13: #{tpu_custom_call.1} parent=1 // pred_fallthru
      _
    // Predicated region
    $region14: #{tpu_custom_call.1} parent=1 // pred_check
      _
    $region15: #{tpu_custom_call.1} parent=1 // pred_check_branch
      %59 = sbr.rel (0) target = $region17
    $region16: #{tpu_custom_call.1} parent=1 // pred_region
      %61 = vsyncadd [#allocation9], 0
      %s63 = sshll.u32 %s3, 4
      %s64 = int_to_ptr.hbm [resolvable:$true] %s63
      %s65 = sshll.u32 [#allocation8], 4
      %s66 = int_to_ptr.vmem [resolvable:$true] %s65
      %68 = dma.hbm_to_vmem [thread:$0]  %s64, 128, %s66, [#allocation9]
    $region17: #{tpu_custom_call.1} parent=1 // pred_fallthru
      _
    // Predicated region
    $region18: #{tpu_custom_call.1} parent=1 // pred_check
      _
    $region19: #{tpu_custom_call.1} parent=1 // pred_check_branch
      %70 = sbr.rel (0) target = $region21
    $region20: #{tpu_custom_call.1} parent=1 // pred_region
      %72 = vsyncadd [#allocation9], 0
      %s73 = sshll.u32 %s4, 4
      %s74 = int_to_ptr.hbm [resolvable:$true] %s73
      %s75 = sshll.u32 [#allocation10], 4
      %s76 = int_to_ptr.vmem [resolvable:$true] %s75
      %81 = dma.hbm_to_vmem [thread:$0]  %s74, 512, %s76, [#allocation9], 128, 128, 8
    $region21: #{tpu_custom_call.1} parent=1 // pred_fallthru
      _
    // Predicated region
    $region22: #{tpu_custom_call.1} parent=1 // pred_check
      _
    $region23: #{tpu_custom_call.1} parent=1 // pred_check_branch
      %83 = sbr.rel (0) target = $region25
    $region24: #{tpu_custom_call.1} parent=1 // pred_region
      %85 = vsyncadd [#allocation12], 0
      %s86 = sshll.u32 %s5, 4
      %s87 = int_to_ptr.hbm [resolvable:$true] %s86
      %s88 = sshll.u32 [#allocation11], 4
      %s89 = int_to_ptr.vmem [resolvable:$true] %s88
      %94 = dma.hbm_to_vmem [thread:$0]  %s87, 512, %s89, [#allocation12], 128, 128, 8
    $region25: #{tpu_custom_call.1} parent=1 // pred_fallthru
      _
    // Predicated region
    $region26: #{tpu_custom_call.1} parent=1 // pred_check
      _
    $region27: #{tpu_custom_call.1} parent=1 // pred_check_branch
      %96 = sbr.rel (0) target = $region29
    $region28: #{tpu_custom_call.1} parent=1 // pred_region
      _
    $region29: #{tpu_custom_call.1} parent=1 // pred_fallthru
      _
    // Predicated region
    $region30: #{tpu_custom_call.1} parent=1 // pred_check
      _
    $region31: #{tpu_custom_call.1} parent=1 // pred_check_branch
      %98 = sbr.rel (0) target = $region33
    $region32: #{tpu_custom_call.1} parent=1 // pred_region
      %100 = vsyncadd [#allocation12], 0
      %s101 = sshll.u32 %s7, 4
      %s102 = int_to_ptr.hbm [resolvable:$true] %s101
      %s103 = sshll.u32 [#allocation13], 4
      %s104 = int_to_ptr.vmem [resolvable:$true] %s103
      %109 = dma.hbm_to_vmem [thread:$0]  %s102, 512, %s104, [#allocation12], 128, 128, 8
    $region33: #{tpu_custom_call.1} parent=1 // pred_fallthru
      _
    // Predicated region
    $region34: #{tpu_custom_call.1} parent=1 // pred_check
      _
    $region35: #{tpu_custom_call.1} parent=1 // pred_check_branch
      %111 = sbr.rel (0) target = $region37
    $region36: #{tpu_custom_call.1} parent=1 // pred_region
      %113 = vsyncadd [#allocation15], 0
      %s114 = sshll.u32 %s8, 4
      %s115 = int_to_ptr.hbm [resolvable:$true] %s114
      %s116 = sshll.u32 [#allocation14], 4
      %s117 = int_to_ptr.vmem [resolvable:$true] %s116
      %122 = dma.hbm_to_vmem [thread:$0]  %s115, 512, %s117, [#allocation15], 128, 128, 8
    $region37: #{tpu_custom_call.1} parent=1 // pred_fallthru
      _
    // Predicated region
    $region38: #{tpu_custom_call.1} parent=1 // pred_check
      _
    $region39: #{tpu_custom_call.1} parent=1 // pred_check_branch
      %124 = sbr.rel (0) target = $region41
    $region40: #{tpu_custom_call.1} parent=1 // pred_region
      %126 = dma.done [#allocation3], 1024
    $region41: #{tpu_custom_call.1} parent=1 // pred_fallthru
      _
    // Predicated region
    $region42: #{tpu_custom_call.1} parent=1 // pred_check
      _
    $region43: #{tpu_custom_call.1} parent=1 // pred_check_branch
      %128 = sbr.rel (0) target = $region45
    $region44: #{tpu_custom_call.1} parent=1 // pred_region
      %130 = dma.done [#allocation6], 128
    $region45: #{tpu_custom_call.1} parent=1 // pred_fallthru
      _
    // Predicated region
    $region46: #{tpu_custom_call.1} parent=1 // pred_check
      _
    $region47: #{tpu_custom_call.1} parent=1 // pred_check_branch
      %132 = sbr.rel (0) target = $region49
    $region48: #{tpu_custom_call.1} parent=1 // pred_region
      %134 = dma.done [#allocation6], 128
    $region49: #{tpu_custom_call.1} parent=1 // pred_fallthru
      _
    // Predicated region
    $region50: #{tpu_custom_call.1} parent=1 // pred_check
      _
    $region51: #{tpu_custom_call.1} parent=1 // pred_check_branch
      %136 = sbr.rel (0) target = $region53
    $region52: #{tpu_custom_call.1} parent=1 // pred_region
      %138 = dma.done [#allocation9], 128
    $region53: #{tpu_custom_call.1} parent=1 // pred_fallthru
      _
    // Predicated region
    $region54: #{tpu_custom_call.1} parent=1 // pred_check
      _
    $region55: #{tpu_custom_call.1} parent=1 // pred_check_branch
      %140 = sbr.rel (0) target = $region57
    $region56: #{tpu_custom_call.1} parent=1 // pred_region
      %142 = dma.done [#allocation9], 512
    $region57: #{tpu_custom_call.1} parent=1 // pred_fallthru
      _
    // Predicated region
    $region58: #{tpu_custom_call.1} parent=1 // pred_check
      _
    $region59: #{tpu_custom_call.1} parent=1 // pred_check_branch
      %144 = sbr.rel (0) target = $region61
    $region60: #{tpu_custom_call.1} parent=1 // pred_region
      %146 = dma.done [#allocation12], 512
    $region61: #{tpu_custom_call.1} parent=1 // pred_fallthru
      _
    // Predicated region
    $region62: #{tpu_custom_call.1} parent=1 // pred_check
      _
    $region63: #{tpu_custom_call.1} parent=1 // pred_check_branch
      %148 = sbr.rel (0) target = $region65
    $region64: #{tpu_custom_call.1} parent=1 // pred_region
      %150 = dma.done [#allocation12], 512
    $region65: #{tpu_custom_call.1} parent=1 // pred_fallthru
      _
    // Predicated region
    $region66: #{tpu_custom_call.1} parent=1 // pred_check
      _
    $region67: #{tpu_custom_call.1} parent=1 // pred_check_branch
      %152 = sbr.rel (0) target = $region69
    $region68: #{tpu_custom_call.1} parent=1 // pred_region
      %154 = dma.done [#allocation15], 512
    $region69: #{tpu_custom_call.1} parent=1 // pred_fallthru
      _
    %v155 = vld [vmem:[#allocation2] sm:$0xff]
    %v156 = vld [vmem:[#allocation2 + $0x8] sm:$0xff]
    %v157 = vld [vmem:[#allocation2 + $0x10] sm:$0xff]
    %v158 = vld [vmem:[#allocation2 + $0x18] sm:$0xff]
    %v159 = vld [vmem:[#allocation2 + $0x20] sm:$0xff]
    %v160 = vld [vmem:[#allocation2 + $0x28] sm:$0xff]
    %v161 = vld [vmem:[#allocation2 + $0x30] sm:$0xff]
    %v162 = vld [vmem:[#allocation2 + $0x38] sm:$0xff]
    %v163 = vld [vmem:[#allocation5] sm:$0xff]
    %v164 = vld [vmem:[#allocation7] sm:$0xff]
    %v165 = vld [vmem:[%s6] sm:$0x3]
    %v166 = vld [vmem:[#allocation10] sm:$0xff]
    %v167 = vld [vmem:[#allocation10 + $0x8] sm:$0xff]
    %v168 = vld [vmem:[#allocation10 + $0x10] sm:$0xff]
    %v169 = vld [vmem:[#allocation10 + $0x18] sm:$0xff]
    %vm170 = vcmask 261120
    %v172 = vsel %vm170, %v155, 0
    %v175 = vsel %vm170, %v156, 0
    %v178 = vsel %vm170, %v157, 0
    %v181 = vsel %vm170, %v158, 0
    %v184 = vsel %vm170, %v159, 0
    %v187 = vsel %vm170, %v160, 0
    %v190 = vsel %vm170, %v161, 0
    %v193 = vsel %vm170, %v162, 0
    %195 = vmatpush.msra.mxu0 0.0
    %196 = vmatpush.msra.mxu0 0.0
    %197 = vmatpush.msra.mxu0 0.0
    %198 = vmatpush.msra.mxu0 0.0
    %199 = vmatpush.msra.mxu0 0.0
    %200 = vmatpush.msra.mxu0 0.0
    %201 = vmatpush.msra.mxu0 0.0
    %202 = vmatpush.msra.mxu0 0.0
    %203 = vmatpush.msra.mxu0 0.0
    %204 = vmatpush.msra.mxu0 0.0
    %205 = vmatpush.msra.mxu0 0.0
    %206 = vmatpush.msra.mxu0 0.0
    %207 = vmatpush.msra.mxu0 %v169
    %208 = vmatpush.msra.mxu0 %v168
    %209 = vmatpush.msra.mxu0 %v167
    %210 = vmatpush.msra.mxu0 %v166
    %211 = vmatmul.f32.gmra.mxu0 %v172
    %v212 = vpop.f32.mrf.mxu0
    %v213 = vadd.f32 0.0, %v212
    %214 = vmatmul.f32.gmra.mxu0 %v175
    %v215 = vpop.f32.mrf.mxu0
    %v216 = vadd.f32 0.0, %v215
    %217 = vmatmul.f32.gmra.mxu0 %v178
    %v218 = vpop.f32.mrf.mxu0
    %v219 = vadd.f32 0.0, %v218
    %220 = vmatmul.f32.gmra.mxu0 %v181
    %v221 = vpop.f32.mrf.mxu0
    %v222 = vadd.f32 0.0, %v221
    %223 = vmatmul.f32.gmra.mxu0 %v184
    %v224 = vpop.f32.mrf.mxu0
    %v225 = vadd.f32 0.0, %v224
    %226 = vmatmul.f32.gmra.mxu0 %v187
    %v227 = vpop.f32.mrf.mxu0
    %v228 = vadd.f32 0.0, %v227
    %229 = vmatmul.f32.gmra.mxu0 %v190
    %v230 = vpop.f32.mrf.mxu0
    %v231 = vadd.f32 0.0, %v230
    %232 = vmatmul.f32.gmra.mxu0 %v193
    %v233 = vpop.f32.mrf.mxu0
    %v234 = vadd.f32 0.0, %v233
    %235 = vdwg.mxu0
    %v236 = vld [vmem:[#allocation11] sm:$0xff]
    %v237 = vld [vmem:[#allocation11 + $0x8] sm:$0xff]
    %v238 = vld [vmem:[#allocation11 + $0x10] sm:$0xff]
    %v239 = vld [vmem:[#allocation11 + $0x18] sm:$0xff]
    %v240 = vperm.slane %v165, 0
    %v242 = vsel %vm170, %v163, 0
    %244 = vmatpush.msra.mxu0 0.0
    %245 = vmatpush.msra.mxu0 0.0
    %246 = vmatpush.msra.mxu0 0.0
    %247 = vmatpush.msra.mxu0 0.0
    %248 = vmatpush.msra.mxu0 0.0
    %249 = vmatpush.msra.mxu0 0.0
    %250 = vmatpush.msra.mxu0 0.0
    %251 = vmatpush.msra.mxu0 0.0
    %252 = vmatpush.msra.mxu0 0.0
    %253 = vmatpush.msra.mxu0 0.0
    %254 = vmatpush.msra.mxu0 0.0
    %255 = vmatpush.msra.mxu0 0.0
    %256 = vmatpush.msra.mxu0 %v239
    %257 = vmatpush.msra.mxu0 %v238
    %258 = vmatpush.msra.mxu0 %v237
    %259 = vmatpush.msra.mxu0 %v236
    %260 = vmatmul.f32.gmra.mxu0 %v242
    %v261 = vpop.f32.mrf.mxu0
    %v262 = vadd.f32 %v240, %v261
    %263 = vdwg.mxu0
    %v265 = vrot.slane %v262, 1
    %v266 = vrot.slane %v262, 2
    %v267 = vrot.slane %v262, 3
    %v268 = vrot.slane %v262, 4
    %v269 = vrot.slane %v262, 5
    %v270 = vrot.slane %v262, 6
    %v271 = vrot.slane %v262, 7
    %v272 = vperm.slane %v262, 0
    %v273 = vperm.slane %v265, 0
    %v274 = vperm.slane %v266, 0
    %v275 = vperm.slane %v267, 0
    %v276 = vperm.slane %v268, 0
    %v277 = vperm.slane %v269, 0
    %v278 = vperm.slane %v270, 0
    %v279 = vperm.slane %v271, 0
    %v288 = vadd.f32 %v213, %v272
    %v289 = vadd.f32 %v216, %v273
    %v290 = vadd.f32 %v219, %v274
    %v291 = vadd.f32 %v222, %v275
    %v292 = vadd.f32 %v225, %v276
    %v293 = vadd.f32 %v228, %v277
    %v294 = vadd.f32 %v231, %v278
    %v295 = vadd.f32 %v234, %v279
    %v296 = vtanh.pop %v288
    %v297 = vtanh.pop %v289
    %v298 = vtanh.pop %v290
    %v299 = vtanh.pop %v291
    %v300 = vtanh.pop %v292
    %v301 = vtanh.pop %v293
    %v302 = vtanh.pop %v294
    %v303 = vtanh.pop %v295
    %v304 = vperm.slane %v165, 1
    %v305 = vmul.f32 %v296, %v304
    %v306 = vmul.f32 %v297, %v304
    %v307 = vmul.f32 %v298, %v304
    %v308 = vmul.f32 %v299, %v304
    %v309 = vmul.f32 %v300, %v304
    %v310 = vmul.f32 %v301, %v304
    %v311 = vmul.f32 %v302, %v304
    %v312 = vmul.f32 %v303, %v304
    %v313 = vsel %vm170, %v305, 0.0
    %314 = vadd.xlane.f32.xlu0 %v313
    %v315 = vpop.xlane.xlu0 %314
    %v316 = vsel %vm170, %v306, 0.0
    %317 = vadd.xlane.f32.xlu0 %v316
    %v318 = vpop.xlane.xlu0 %317
    %v319 = vsel %vm170, %v307, 0.0
    %320 = vadd.xlane.f32.xlu0 %v319
    %v321 = vpop.xlane.xlu0 %320
    %v322 = vsel %vm170, %v308, 0.0
    %323 = vadd.xlane.f32.xlu0 %v322
    %v324 = vpop.xlane.xlu0 %323
    %v325 = vsel %vm170, %v309, 0.0
    %326 = vadd.xlane.f32.xlu0 %v325
    %v327 = vpop.xlane.xlu0 %326
    %v328 = vsel %vm170, %v310, 0.0
    %329 = vadd.xlane.f32.xlu0 %v328
    %v330 = vpop.xlane.xlu0 %329
    %v331 = vsel %vm170, %v311, 0.0
    %332 = vadd.xlane.f32.xlu0 %v331
    %v333 = vpop.xlane.xlu0 %332
    %v334 = vsel %vm170, %v312, 0.0
    %335 = vadd.xlane.f32.xlu0 %v334
    %v336 = vpop.xlane.xlu0 %335
    %v345 = vlaneseq
    %v346 = vand.u32 %v345, 127
    %v347 = vperm.slane %v315, %v346
    %v348 = vperm.slane %v318, %v346
    %v349 = vperm.slane %v321, %v346
    %v350 = vperm.slane %v324, %v346
    %v351 = vperm.slane %v327, %v346
    %v352 = vperm.slane %v330, %v346
    %v353 = vperm.slane %v333, %v346
    %v354 = vperm.slane %v336, %v346
    %vm355 = vcmask 1041409
    %v356 = vsel %vm355, %v348, %v347
    %vm357 = vcmask 1042434
    %v358 = vsel %vm357, %v349, %v356
    %vm359 = vcmask 1043459
    %v360 = vsel %vm359, %v350, %v358
    %vm361 = vcmask 1044484
    %v362 = vsel %vm361, %v351, %v360
    %vm363 = vcmask 1045509
    %v364 = vsel %vm363, %v352, %v362
    %vm365 = vcmask 1046534
    %v366 = vsel %vm365, %v353, %v364
    %vm367 = vcmask 1047559
    %v368 = vsel %vm367, %v354, %v366
    %vm370 = vcmask 64512
    %v371 = vsel %vm370, %v368, -inf
    %372 = vmax.xlane.f32.xlu0 %v371
    %v373 = vpop.xlane.xlu0 %372
    %v375 = vperm.slane %v373, 0
    %v376 = vperm.slane %v373, 1
    %v377 = vperm.slane %v373, 2
    %v378 = vperm.slane %v373, 3
    %v379 = vperm.slane %v373, 4
    %v380 = vperm.slane %v373, 5
    %v381 = vperm.slane %v373, 6
    %v382 = vperm.slane %v373, 7
    %v391 = vsub.f32 %v315, %v375
    %v392 = vsub.f32 %v318, %v376
    %v393 = vsub.f32 %v321, %v377
    %v394 = vsub.f32 %v324, %v378
    %v395 = vsub.f32 %v327, %v379
    %v396 = vsub.f32 %v330, %v380
    %v397 = vsub.f32 %v333, %v381
    %v398 = vsub.f32 %v336, %v382
    %v399 = vmul.f32 %v391, 1.442695
    %v400 = vpow.pop %v399
    %v401 = vmul.f32 %v392, 1.442695
    %v402 = vpow.pop %v401
    %v403 = vmul.f32 %v393, 1.442695
    %v404 = vpow.pop %v403
    %v405 = vmul.f32 %v394, 1.442695
    %v406 = vpow.pop %v405
    %v407 = vmul.f32 %v395, 1.442695
    %v408 = vpow.pop %v407
    %v409 = vmul.f32 %v396, 1.442695
    %v410 = vpow.pop %v409
    %v411 = vmul.f32 %v397, 1.442695
    %v412 = vpow.pop %v411
    %v413 = vmul.f32 %v398, 1.442695
    %v414 = vpow.pop %v413
    %423 = vset.pattern.permute.xlu0 0
    %424 = vperm.xlu0 %423, %v400
    %v425 = vpop.permute.xlu0 %424
    %426 = vset.pattern.permute.xlu0 0
    %427 = vperm.xlu0 %426, %v402
    %v428 = vpop.permute.xlu0 %427
    %429 = vset.pattern.permute.xlu0 0
    %430 = vperm.xlu0 %429, %v404
    %v431 = vpop.permute.xlu0 %430
    %432 = vset.pattern.permute.xlu0 0
    %433 = vperm.xlu0 %432, %v406
    %v434 = vpop.permute.xlu0 %433
    %435 = vset.pattern.permute.xlu0 0
    %436 = vperm.xlu0 %435, %v408
    %v437 = vpop.permute.xlu0 %436
    %438 = vset.pattern.permute.xlu0 0
    %439 = vperm.xlu0 %438, %v410
    %v440 = vpop.permute.xlu0 %439
    %441 = vset.pattern.permute.xlu0 0
    %442 = vperm.xlu0 %441, %v412
    %v443 = vpop.permute.xlu0 %442
    %444 = vset.pattern.permute.xlu0 0
    %445 = vperm.xlu0 %444, %v414
    %v446 = vpop.permute.xlu0 %445
    %v447 = vperm.slane %v425, %v346
    %v448 = vperm.slane %v428, %v346
    %v449 = vperm.slane %v431, %v346
    %v450 = vperm.slane %v434, %v346
    %v451 = vperm.slane %v437, %v346
    %v452 = vperm.slane %v440, %v346
    %v453 = vperm.slane %v443, %v346
    %v454 = vperm.slane %v446, %v346
    %v455 = vsel %vm355, %v448, %v447
    %v456 = vsel %vm357, %v449, %v455
    %v457 = vsel %vm359, %v450, %v456
    %v458 = vsel %vm361, %v451, %v457
    %v459 = vsel %vm363, %v452, %v458
    %v460 = vsel %vm365, %v453, %v459
    %v461 = vsel %vm367, %v454, %v460
    %v463 = vsel %vm370, %v461, 0.0
    %464 = vadd.xlane.f32.xlu0 %v463
    %v465 = vpop.xlane.xlu0 %464
    %v467 = vperm.slane %v465, 0
    %v468 = vperm.slane %v465, 1
    %v469 = vperm.slane %v465, 2
    %v470 = vperm.slane %v465, 3
    %v471 = vperm.slane %v465, 4
    %v472 = vperm.slane %v465, 5
    %v473 = vperm.slane %v465, 6
    %v474 = vperm.slane %v465, 7
    %v483 = vrcp.pop %v467
    %v484 = vmul.f32 %v467, %v483
    %v485 = vsub.f32 1.0, %v484
    %v486 = vmul.f32 %v483, %v485
    %v487 = vadd.f32 %v483, %v486
    %vm488 = vweird.f32 %v467
    %vm489 = vweird.f32 %v483
    %vm490 = vmor %vm488, %vm489
    %v491 = vsel %vm490, %v483, %v487
    %v492 = vand.u32 2147483647, %v467
    %vm493 = vcmp.eq.f32.partialorder %v492, 8.507059e+37
    %v494 = vand.u32 %v467, 2147483648
    %v495 = vor.u32 1.1754944e-38, %v494
    %v496 = vsel %vm493, %v495, %v491
    %v497 = vmul.f32 %v400, %v496
    %v498 = vrcp.pop %v468
    %v499 = vmul.f32 %v468, %v498
    %v500 = vsub.f32 1.0, %v499
    %v501 = vmul.f32 %v498, %v500
    %v502 = vadd.f32 %v498, %v501
    %vm503 = vweird.f32 %v468
    %vm504 = vweird.f32 %v498
    %vm505 = vmor %vm503, %vm504
    %v506 = vsel %vm505, %v498, %v502
    %v507 = vand.u32 2147483647, %v468
    %vm508 = vcmp.eq.f32.partialorder %v507, 8.507059e+37
    %v509 = vand.u32 %v468, 2147483648
    %v510 = vor.u32 1.1754944e-38, %v509
    %v511 = vsel %vm508, %v510, %v506
    %v512 = vmul.f32 %v402, %v511
    %v513 = vrcp.pop %v469
    %v514 = vmul.f32 %v469, %v513
    %v515 = vsub.f32 1.0, %v514
    %v516 = vmul.f32 %v513, %v515
    %v517 = vadd.f32 %v513, %v516
    %vm518 = vweird.f32 %v469
    %vm519 = vweird.f32 %v513
    %vm520 = vmor %vm518, %vm519
    %v521 = vsel %vm520, %v513, %v517
    %v522 = vand.u32 2147483647, %v469
    %vm523 = vcmp.eq.f32.partialorder %v522, 8.507059e+37
    %v524 = vand.u32 %v469, 2147483648
    %v525 = vor.u32 1.1754944e-38, %v524
    %v526 = vsel %vm523, %v525, %v521
    %v527 = vmul.f32 %v404, %v526
    %v528 = vrcp.pop %v470
    %v529 = vmul.f32 %v470, %v528
    %v530 = vsub.f32 1.0, %v529
    %v531 = vmul.f32 %v528, %v530
    %v532 = vadd.f32 %v528, %v531
    %vm533 = vweird.f32 %v470
    %vm534 = vweird.f32 %v528
    %vm535 = vmor %vm533, %vm534
    %v536 = vsel %vm535, %v528, %v532
    %v537 = vand.u32 2147483647, %v470
    %vm538 = vcmp.eq.f32.partialorder %v537, 8.507059e+37
    %v539 = vand.u32 %v470, 2147483648
    %v540 = vor.u32 1.1754944e-38, %v539
    %v541 = vsel %vm538, %v540, %v536
    %v542 = vmul.f32 %v406, %v541
    %v543 = vrcp.pop %v471
    %v544 = vmul.f32 %v471, %v543
    %v545 = vsub.f32 1.0, %v544
    %v546 = vmul.f32 %v543, %v545
    %v547 = vadd.f32 %v543, %v546
    %vm548 = vweird.f32 %v471
    %vm549 = vweird.f32 %v543
    %vm550 = vmor %vm548, %vm549
    %v551 = vsel %vm550, %v543, %v547
    %v552 = vand.u32 2147483647, %v471
    %vm553 = vcmp.eq.f32.partialorder %v552, 8.507059e+37
    %v554 = vand.u32 %v471, 2147483648
    %v555 = vor.u32 1.1754944e-38, %v554
    %v556 = vsel %vm553, %v555, %v551
    %v557 = vmul.f32 %v408, %v556
    %v558 = vrcp.pop %v472
    %v559 = vmul.f32 %v472, %v558
    %v560 = vsub.f32 1.0, %v559
    %v561 = vmul.f32 %v558, %v560
    %v562 = vadd.f32 %v558, %v561
    %vm563 = vweird.f32 %v472
    %vm564 = vweird.f32 %v558
    %vm565 = vmor %vm563, %vm564
    %v566 = vsel %vm565, %v558, %v562
    %v567 = vand.u32 2147483647, %v472
    %vm568 = vcmp.eq.f32.partialorder %v567, 8.507059e+37
    %v569 = vand.u32 %v472, 2147483648
    %v570 = vor.u32 1.1754944e-38, %v569
    %v571 = vsel %vm568, %v570, %v566
    %v572 = vmul.f32 %v410, %v571
    %v573 = vrcp.pop %v473
    %v574 = vmul.f32 %v473, %v573
    %v575 = vsub.f32 1.0, %v574
    %v576 = vmul.f32 %v573, %v575
    %v577 = vadd.f32 %v573, %v576
    %vm578 = vweird.f32 %v473
    %vm579 = vweird.f32 %v573
    %vm580 = vmor %vm578, %vm579
    %v581 = vsel %vm580, %v573, %v577
    %v582 = vand.u32 2147483647, %v473
    %vm583 = vcmp.eq.f32.partialorder %v582, 8.507059e+37
    %v584 = vand.u32 %v473, 2147483648
    %v585 = vor.u32 1.1754944e-38, %v584
    %v586 = vsel %vm583, %v585, %v581
    %v587 = vmul.f32 %v412, %v586
    %v588 = vrcp.pop %v474
    %v589 = vmul.f32 %v474, %v588
    %v590 = vsub.f32 1.0, %v589
    %v591 = vmul.f32 %v588, %v590
    %v592 = vadd.f32 %v588, %v591
    %vm593 = vweird.f32 %v474
    %vm594 = vweird.f32 %v588
    %vm595 = vmor %vm593, %vm594
    %v596 = vsel %vm595, %v588, %v592
    %v597 = vand.u32 2147483647, %v474
    %vm598 = vcmp.eq.f32.partialorder %v597, 8.507059e+37
    %v599 = vand.u32 %v474, 2147483648
    %v600 = vor.u32 1.1754944e-38, %v599
    %v601 = vsel %vm598, %v600, %v596
    %v602 = vmul.f32 %v414, %v601
    %604 = vset.pattern.permute.xlu0 0
    %605 = vperm.xlu0 %604, %v497
    %v606 = vpop.permute.xlu0 %605
    %609 = vset.pattern.permute.xlu0 0
    %610 = vperm.xlu0 %609, %v512
    %v611 = vpop.permute.xlu0 %610
    %614 = vset.pattern.permute.xlu0 0
    %615 = vperm.xlu0 %614, %v527
    %v616 = vpop.permute.xlu0 %615
    %619 = vset.pattern.permute.xlu0 0
    %620 = vperm.xlu0 %619, %v542
    %v621 = vpop.permute.xlu0 %620
    %624 = vset.pattern.permute.xlu0 0
    %625 = vperm.xlu0 %624, %v557
    %v626 = vpop.permute.xlu0 %625
    %629 = vset.pattern.permute.xlu0 0
    %630 = vperm.xlu0 %629, %v572
    %v631 = vpop.permute.xlu0 %630
    %634 = vset.pattern.permute.xlu0 0
    %635 = vperm.xlu0 %634, %v587
    %v636 = vpop.permute.xlu0 %635
    %639 = vset.pattern.permute.xlu0 0
    %640 = vperm.xlu0 %639, %v602
    %v641 = vpop.permute.xlu0 %640
    %v643 = vmul.f32 %v155, %v606
    %v644 = vmul.f32 %v156, %v611
    %v645 = vmul.f32 %v157, %v616
    %v646 = vmul.f32 %v158, %v621
    %v647 = vmul.f32 %v159, %v626
    %v648 = vmul.f32 %v160, %v631
    %v649 = vmul.f32 %v161, %v636
    %v650 = vmul.f32 %v162, %v641
    %v651 = vsel %vm170, %v643, 0.0
    %v652 = vrot.slane %v651, 4
    %v653 = vadd.f32 %v651, %v652
    %v654 = vrot.slane %v653, 2
    %v655 = vadd.f32 %v653, %v654
    %v656 = vrot.slane %v655, 1
    %v657 = vadd.f32 %v655, %v656
    %v658 = vsel %vm170, %v644, 0.0
    %v659 = vrot.slane %v658, 4
    %v660 = vadd.f32 %v658, %v659
    %v661 = vrot.slane %v660, 2
    %v662 = vadd.f32 %v660, %v661
    %v663 = vrot.slane %v662, 1
    %v664 = vadd.f32 %v662, %v663
    %v665 = vsel %vm170, %v645, 0.0
    %v666 = vrot.slane %v665, 4
    %v667 = vadd.f32 %v665, %v666
    %v668 = vrot.slane %v667, 2
    %v669 = vadd.f32 %v667, %v668
    %v670 = vrot.slane %v669, 1
    %v671 = vadd.f32 %v669, %v670
    %v672 = vsel %vm170, %v646, 0.0
    %v673 = vrot.slane %v672, 4
    %v674 = vadd.f32 %v672, %v673
    %v675 = vrot.slane %v674, 2
    %v676 = vadd.f32 %v674, %v675
    %v677 = vrot.slane %v676, 1
    %v678 = vadd.f32 %v676, %v677
    %v679 = vsel %vm170, %v647, 0.0
    %v680 = vrot.slane %v679, 4
    %v681 = vadd.f32 %v679, %v680
    %v682 = vrot.slane %v681, 2
    %v683 = vadd.f32 %v681, %v682
    %v684 = vrot.slane %v683, 1
    %v685 = vadd.f32 %v683, %v684
    %v686 = vsel %vm170, %v648, 0.0
    %v687 = vrot.slane %v686, 4
    %v688 = vadd.f32 %v686, %v687
    %v689 = vrot.slane %v688, 2
    %v690 = vadd.f32 %v688, %v689
    %v691 = vrot.slane %v690, 1
    %v692 = vadd.f32 %v690, %v691
    %v693 = vsel %vm170, %v649, 0.0
    %v694 = vrot.slane %v693, 4
    %v695 = vadd.f32 %v693, %v694
    %v696 = vrot.slane %v695, 2
    %v697 = vadd.f32 %v695, %v696
    %v698 = vrot.slane %v697, 1
    %v699 = vadd.f32 %v697, %v698
    %v700 = vsel %vm170, %v650, 0.0
    %v701 = vrot.slane %v700, 4
    %v702 = vadd.f32 %v700, %v701
    %v703 = vrot.slane %v702, 2
    %v704 = vadd.f32 %v702, %v703
    %v705 = vrot.slane %v704, 1
    %v706 = vadd.f32 %v704, %v705
    %v707 = vld [vmem:[#allocation13] sm:$0xff]
    %v708 = vld [vmem:[#allocation13 + $0x8] sm:$0xff]
    %v709 = vld [vmem:[#allocation13 + $0x10] sm:$0xff]
    %v710 = vld [vmem:[#allocation13 + $0x18] sm:$0xff]
    %v711 = vld [vmem:[#allocation14] sm:$0xff]
    %v712 = vld [vmem:[#allocation14 + $0x8] sm:$0xff]
    %v713 = vld [vmem:[#allocation14 + $0x10] sm:$0xff]
    %v714 = vld [vmem:[#allocation14 + $0x18] sm:$0xff]
    %715 = vmatpush.msra.mxu0 0.0
    %716 = vmatpush.msra.mxu0 0.0
    %717 = vmatpush.msra.mxu0 0.0
    %718 = vmatpush.msra.mxu0 0.0
    %719 = vmatpush.msra.mxu0 0.0
    %720 = vmatpush.msra.mxu0 0.0
    %721 = vmatpush.msra.mxu0 0.0
    %722 = vmatpush.msra.mxu0 0.0
    %723 = vmatpush.msra.mxu0 0.0
    %724 = vmatpush.msra.mxu0 0.0
    %725 = vmatpush.msra.mxu0 0.0
    %726 = vmatpush.msra.mxu0 0.0
    %727 = vmatpush.msra.mxu0 %v714
    %728 = vmatpush.msra.mxu0 %v713
    %729 = vmatpush.msra.mxu0 %v712
    %730 = vmatpush.msra.mxu0 %v711
    %731 = vmatmul.f32.gmra.mxu0 %v242
    %v732 = vpop.f32.mrf.mxu0
    %v733 = vadd.f32 0.0, %v732
    %734 = vdwg.mxu0
    %v743 = vsel %vm355, %v664, %v657
    %v744 = vsel %vm357, %v671, %v743
    %v745 = vsel %vm359, %v678, %v744
    %v746 = vsel %vm361, %v685, %v745
    %v747 = vsel %vm363, %v692, %v746
    %v748 = vsel %vm365, %v699, %v747
    %v749 = vsel %vm367, %v706, %v748
    %v750 = vsel %vm170, %v749, 0
    %752 = vmatpush.msra.mxu0 0.0
    %753 = vmatpush.msra.mxu0 0.0
    %754 = vmatpush.msra.mxu0 0.0
    %755 = vmatpush.msra.mxu0 0.0
    %756 = vmatpush.msra.mxu0 0.0
    %757 = vmatpush.msra.mxu0 0.0
    %758 = vmatpush.msra.mxu0 0.0
    %759 = vmatpush.msra.mxu0 0.0
    %760 = vmatpush.msra.mxu0 0.0
    %761 = vmatpush.msra.mxu0 0.0
    %762 = vmatpush.msra.mxu0 0.0
    %763 = vmatpush.msra.mxu0 0.0
    %764 = vmatpush.msra.mxu0 %v710
    %765 = vmatpush.msra.mxu0 %v709
    %766 = vmatpush.msra.mxu0 %v708
    %767 = vmatpush.msra.mxu0 %v707
    %768 = vmatmul.f32.gmra.mxu0 %v750
    %v769 = vpop.f32.mrf.mxu0
    %v770 = vadd.f32 %v733, %v769
    %771 = vdwg.mxu0
    %v772 = vld [vmem:[#allocation8] sm:$0xff]
    %v773 = vadd.f32 %v770, %v772
    %v774 = vxor.u32 %v773, 2147483648
    %v775 = vmul.f32 %v774, 1.442695
    %v776 = vpow.pop %v775
    %v777 = vadd.f32 %v776, 1.0
    %v778 = vrcp.pop %v777
    %v779 = vmul.f32 %v777, %v778
    %v780 = vsub.f32 1.0, %v779
    %v781 = vmul.f32 %v778, %v780
    %v782 = vadd.f32 %v778, %v781
    %vm783 = vweird.f32 %v777
    %vm784 = vweird.f32 %v778
    %vm785 = vmor %vm783, %vm784
    %v786 = vsel %vm785, %v778, %v782
    %v787 = vand.u32 2147483647, %v777
    %vm788 = vcmp.eq.f32.partialorder %v787, 8.507059e+37
    %v789 = vand.u32 %v777, 2147483648
    %v790 = vor.u32 1.1754944e-38, %v789
    %v791 = vsel %vm788, %v790, %v786
    %v792 = vmul.f32 1.0, %v791
    %v793 = vtanh.pop %v773
    %795 = vrot.lane.b32.xlu0 %v164, 32
    %v796 = vpop.permute.xlu0 %795
    %v798 = vmul.f32 %v792, %v796
    %800 = vrot.lane.b32.xlu0 %v793, 64
    %v801 = vpop.permute.xlu0 %800
    %v803 = vmul.f32 %v792, %v801
    %805 = vrot.lane.b32.xlu0 %v803, 32
    %v806 = vpop.permute.xlu0 %805
    %v808 = vadd.f32 %v798, %v806
    %v809 = vtanh.pop %v808
    %811 = vrot.lane.b32.xlu0 %v809, 64
    %v812 = vpop.permute.xlu0 %811
    %v814 = vmul.f32 %v792, %v812
    %816 = vrot.lane.b32.xlu0 %v814, 32
    %v817 = vpop.permute.xlu0 %816
    %v819 = vsel %vm170, %v817, %v808
    %vm820 = vcmask 523264
    %821 = vst.msk [vmem:[#allocation16] sm:$0xff] %vm820, %v819
    %v822 = vperm.slane %v606, %v346
    %v823 = vperm.slane %v611, %v346
    %v824 = vperm.slane %v616, %v346
    %v825 = vperm.slane %v621, %v346
    %v826 = vperm.slane %v626, %v346
    %v827 = vperm.slane %v631, %v346
    %v828 = vperm.slane %v636, %v346
    %v829 = vperm.slane %v641, %v346
    %v830 = vsel %vm355, %v823, %v822
    %v831 = vsel %vm357, %v824, %v830
    %v832 = vsel %vm359, %v825, %v831
    %v833 = vsel %vm361, %v826, %v832
    %v834 = vsel %vm363, %v827, %v833
    %v835 = vsel %vm365, %v828, %v834
    %v836 = vsel %vm367, %v829, %v835
    %838 = vst.msk [vmem:[#allocation17] sm:$0xff] %vm370, %v836
    // Predicated region
    $region70: #{tpu_custom_call.1} parent=1 // pred_check
      _
    $region71: #{tpu_custom_call.1} parent=1 // pred_check_branch
      %840 = sbr.rel (0) target = $region73
    $region72: #{tpu_custom_call.1} parent=1 // pred_region
      %842 = vsyncadd [#allocation4], 0
      %s844 = sshll.u32 [#allocation16], 4
      %s845 = int_to_ptr.vmem [resolvable:$true] %s844
      %s846 = sshll.u32 %s9, 4
      %s847 = int_to_ptr.hbm [resolvable:$true] %s846
      %849 = dma.vmem_to_hbm [thread:$0]  %s845, 128, %s847, [#allocation4]
    $region73: #{tpu_custom_call.1} parent=1 // pred_fallthru
      _
    // Predicated region
    $region74: #{tpu_custom_call.1} parent=1 // pred_check
      _
    $region75: #{tpu_custom_call.1} parent=1 // pred_check_branch
      %851 = sbr.rel (0) target = $region77
    $region76: #{tpu_custom_call.1} parent=1 // pred_region
      %853 = vsyncadd [#allocation18], 0
      %s855 = sshll.u32 [#allocation17], 4
      %s856 = int_to_ptr.vmem [resolvable:$true] %s855
      %s857 = sshll.u32 %s10, 4
      %s858 = int_to_ptr.hbm [resolvable:$true] %s857
      %860 = dma.vmem_to_hbm [thread:$0]  %s856, 128, %s858, [#allocation18]
    $region77: #{tpu_custom_call.1} parent=1 // pred_fallthru
      _
    // Predicated region
    $region78: #{tpu_custom_call.1} parent=1 // pred_check
      _
    $region79: #{tpu_custom_call.1} parent=1 // pred_check_branch
      %862 = sbr.rel (0) target = $region81
    $region80: #{tpu_custom_call.1} parent=1 // pred_region
      %864 = dma.done [#allocation4], 128
    $region81: #{tpu_custom_call.1} parent=1 // pred_fallthru
      _
    // Predicated region
    $region82: #{tpu_custom_call.1} parent=1 // pred_check
      _
    $region83: #{tpu_custom_call.1} parent=1 // pred_check_branch
      %866 = sbr.rel (0) target = $region85
    $region84: #{tpu_custom_call.1} parent=1 // pred_region
      %868 = dma.done [#allocation18], 128
    $region85: #{tpu_custom_call.1} parent=1 // pred_fallthru
      _
    %869 = vsyncpa [#allocation3], 1
    %870 = vsyncpa [#allocation6], 1
    %871 = vsyncpa [#allocation9], 1
    %872 = vsyncpa [#allocation12], 1
    %873 = vsyncpa [#allocation15], 1
    %874 = vsyncpa [#allocation4], 1
    %875 = vsyncpa [#allocation18], 1

</llo_original>
